<compile_context>
chip_gen: v6e
topology: v6e:2x2x1
jax: 0.10.0
libtpu: 0.0.40
codegen_flags: <defaults>
</compile_context>

<pallas_src>
import functools

import jax
import jax.numpy as jnp
from jax import lax
from jax.experimental import pallas as pl
from jax.experimental.pallas import tpu as pltpu


def _round_up(v, m):
    return -(-v // m) * m


# ----------------------------------------------------------------------------
# Pallas kernel 1: tiled matmul + bias (+ optional ReLU)
# ----------------------------------------------------------------------------
def _matmul_bias_kernel(x_ref, w_ref, b_ref, o_ref, acc_ref, *, activation):
    @pl.when(pl.program_id(2) == 0)
    def _init():
        acc_ref[...] = jnp.zeros_like(acc_ref)

    acc_ref[...] += jnp.dot(x_ref[...], w_ref[...],
                            preferred_element_type=jnp.float32)

    @pl.when(pl.program_id(2) == pl.num_programs(2) - 1)
    def _finalize():
        acc = acc_ref[...] + b_ref[...]          # f32 epilogue
        if activation == "relu":
            acc = jnp.maximum(acc, 0.0)
        o_ref[...] = acc.astype(o_ref.dtype)


def matmul_bias(x, w, b, activation=None):
    """(M,K) @ (K,N) + b[N] (optional ReLU).

    bf16 MXU inputs with f32 accumulation; tiled over (M, N, K) with a VMEM
    accumulator so real-scale shapes (B*H*W x 256..2048 channels) never have
    to fit in a single whole-array block."""
    M, K = x.shape
    N = w.shape[1]
    Kp = _round_up(K, 128)
    Np = _round_up(N, 128)
    tm = min(512, _round_up(M, 8))
    Mp = _round_up(M, tm)
    tk = 256 if (Kp % 256 == 0) else 128          # 256-aligned on v6e/v7x when possible
    tn = 256 if (Np % 256 == 0) else 128

    xp = jnp.pad(x.astype(jnp.bfloat16), ((0, Mp - M), (0, Kp - K)))
    wp = jnp.pad(w.astype(jnp.bfloat16), ((0, Kp - K), (0, Np - N)))
    bp = jnp.pad(b.astype(jnp.float32), (0, Np - N)).reshape(1, Np)

    out = pl.pallas_call(
        functools.partial(_matmul_bias_kernel, activation=activation),
        out_shape=jax.ShapeDtypeStruct((Mp, Np), jnp.float32),
        grid=(Mp // tm, Np // tn, Kp // tk),
        in_specs=[
            pl.BlockSpec((tm, tk), lambda i, j, k: (i, k)),
            pl.BlockSpec((tk, tn), lambda i, j, k: (k, j)),
            pl.BlockSpec((1, tn), lambda i, j, k: (0, j)),
        ],
        out_specs=pl.BlockSpec((tm, tn), lambda i, j, k: (i, j)),
        scratch_shapes=[pltpu.VMEM((tm, tn), jnp.float32)],
        compiler_params=pltpu.CompilerParams(
            dimension_semantics=("parallel", "parallel", "arbitrary")),
    )(xp, wp, bp)
    return out[:M, :N]


# ----------------------------------------------------------------------------
# Pallas kernel 2: fused Mask2Former head.predict (per-batch grid)
#   cls = q @ Wc + bc        (class logits, lane-padded to 128)
#   memb = q @ Wm + bm       (mask embedding)
#   mask = memb @ feat^T     (contract channel axis; no explicit transpose)
#   seg  = softmax(cls)[:, :C]^T @ sigmoid(mask)   (contract query axis)
# ----------------------------------------------------------------------------
def _head_predict_kernel(qf_ref, mf_ref, wc_ref, bc_ref, wm_ref, bm_ref, o_ref,
                         *, num_out_classes):
    qf = qf_ref[...]                                              # (Q, C) bf16

    cls = jnp.dot(qf, wc_ref[...],
                  preferred_element_type=jnp.float32) + bc_ref[...]   # (Q, 128)
    memb = jnp.dot(qf, wm_ref[...],
                   preferred_element_type=jnp.float32) + bm_ref[...]  # (Q, C)

    # per-pixel mask logits: contract channel axis of (Q,C) with (HW,C)
    mask_pred = lax.dot_general(
        memb.astype(jnp.bfloat16), mf_ref[...],
        (((1,), (1,)), ((), ())),
        preferred_element_type=jnp.float32)                       # (Q, HW)

    # softmax over classes in f32 (padded logit columns carry a -1e9 bias)
    m = jnp.max(cls, axis=-1, keepdims=True)
    e = jnp.exp(cls - m)
    probs = e / jnp.sum(e, axis=-1, keepdims=True)
    cls_probs = probs[:, :num_out_classes]                        # (Q, NC8)
    masks = jax.nn.sigmoid(mask_pred)                             # (Q, HW) f32

    # seg[c, p] = sum_q P(c|q) * mask(q, p): contract the query axis directly
    seg = lax.dot_general(cls_probs, masks, (((0,), (0,)), ((), ())),
                          preferred_element_type=jnp.float32)     # (NC8, HW)
    o_ref[...] = seg


def head_predict(query_feats, mask_feat, hp, num_classes, out_hw):
    B, Q, C = query_feats.shape
    _, H4, W4, _ = mask_feat.shape
    HW = H4 * W4
    NCP = 128                                     # lane-padded class-logit width
    NC8 = max(8, _round_up(num_classes, 8))       # sublane-padded output classes
    pad_cls = NCP - (num_classes + 1)

    wc = jnp.pad(hp["w_cls"].astype(jnp.bfloat16), ((0, 0), (0, pad_cls)))
    bc = jnp.pad(hp["b_cls"].astype(jnp.float32), (0, pad_cls),
                 constant_values=-1e9).reshape(1, NCP)
    wm = hp["w_mask"].astype(jnp.bfloat16)
    bm = hp["b_mask"].astype(jnp.float32).reshape(1, C)

    qf = query_feats.astype(jnp.bfloat16)
    mf = mask_feat.reshape(B, HW, C).astype(jnp.bfloat16)

    seg = pl.pallas_call(
        functools.partial(_head_predict_kernel, num_out_classes=NC8),
        out_shape=jax.ShapeDtypeStruct((B, NC8, HW), jnp.float32),
        grid=(B,),
        in_specs=[
            pl.BlockSpec((None, Q, C), lambda b: (b, 0, 0)),
            pl.BlockSpec((None, HW, C), lambda b: (b, 0, 0)),
            pl.BlockSpec((C, NCP), lambda b: (0, 0)),
            pl.BlockSpec((1, NCP), lambda b: (0, 0)),
            pl.BlockSpec((C, C), lambda b: (0, 0)),
            pl.BlockSpec((1, C), lambda b: (0, 0)),
        ],
        out_specs=pl.BlockSpec((None, NC8, HW), lambda b: (b, 0, 0)),
        compiler_params=pltpu.CompilerParams(
            dimension_semantics=("parallel",)),
    )(qf, mf, wc, bc, wm, bm)

    seg = seg[:, :num_classes, :].reshape(B, num_classes, H4, W4)
    # TODO(synk): real Mask2Former upsamples per-query masks before fusion; here
    # the fused logits are upsampled instead (framework glue, outside Pallas).
    return jax.image.resize(seg, (B, num_classes, out_hw[0], out_hw[1]),
                            method="bilinear")


# ----------------------------------------------------------------------------
# Glue helpers (plain JAX)
# ----------------------------------------------------------------------------
def avg_pool(x, s):
    # TODO(synk): fusing this downsample into the conv1x1 Pallas kernel would
    # remove one HBM round-trip per encoder stage; kept as plain-JAX glue.
    B, H, W, C = x.shape
    return x.reshape(B, H // s, s, W // s, s, C).mean(axis=(2, 4))


def conv1x1(x, w, b, activation=None):
    B, H, W, Cin = x.shape
    Cout = w.shape[1]
    y = matmul_bias(x.reshape(B * H * W, Cin), w, b, activation)
    return y.reshape(B, H, W, Cout)


def kaiming_uniform(key, fan_in, shape):
    bound = (6.0 / fan_in) ** 0.5
    return jax.random.uniform(key, shape, jnp.float32, -bound, bound)


def xavier_uniform(key, fan_in, fan_out, shape):
    bound = (6.0 / (fan_in + fan_out)) ** 0.5
    return jax.random.uniform(key, shape, jnp.float32, -bound, bound)


# ----------------------------------------------------------------------------
# Framework (scaled-down, eval/predict path)
# ----------------------------------------------------------------------------
ENC_CH = (16, 32, 64, 128)   # scaled stand-in for ResNet-50 stage channels (256..2048)
FEAT_CH = 32                 # scaled stand-in for Mask2Former feat_channels=256
NUM_QUERIES = 16             # scaled stand-in for num_queries=100


def encoder_forward(enc_params, x_nchw):
    # TODO(synk): real ResNet-50 / Swin-T residual stages are not reproduced;
    # each stage is avg-pool downsample + 1x1 conv + ReLU (kaiming init).
    x = jnp.transpose(x_nchw, (0, 2, 3, 1))        # NCHW -> NHWC
    feats = []
    h = x
    for i, (w, b) in enumerate(enc_params):
        h = avg_pool(h, 4 if i == 0 else 2)
        h = conv1x1(h, w, b, "relu")               # Pallas tiled matmul
        feats.append(h)
    return feats                                   # strides 4, 8, 16, 32


def decoder_decode(dec_params, feats):
    laterals = [conv1x1(f, w, b, "relu")           # Pallas tiled matmul per level
                for f, (w, b) in zip(feats, dec_params["laterals"])]
    mask_feat = laterals[0]                        # [B, H/4, W/4, FEAT_CH]
    # TODO(synk): the 9 masked-attention transformer decoder layers of
    # Mask2Former are not reproduced; queries = learned embedding + a
    # global-context projection of the coarsest level.
    ctx = laterals[-1].mean(axis=(1, 2))           # [B, FEAT_CH]
    ctx = matmul_bias(ctx, dec_params["w_qmix"], dec_params["b_qmix"], "relu")
    q = dec_params["query_embed"][None, :, :] + ctx[:, None, :]   # [B, Q, FEAT_CH]
    return q, mask_feat


def _framework_forward(params, x1, x2, x3, *, datasets, classes):
    output = []
    results = [0, 0, 0]                            # matches PyTorch o1=o2=o3=0
    inputs = (x1, x2, x3)
    tags = ("sota", "sior", "fast")
    for i, (tag, x) in enumerate(zip(tags, inputs)):
        if tag in datasets:
            feats = encoder_forward(params["encoder"], x)
            d, a = decoder_decode(params["decoder"], feats)
            results[i] = head_predict(d, a, params["heads"][i], classes[i],
                                      (x.shape[2], x.shape[3]))
        output.append(results[i])
    return output


class SemsegPretrnFrameworkPallas:
    def __init__(self, args, classes1=1, classes2=1, classes3=1):
        self.args = args
        self.classes = (classes1, classes2, classes3)
        key = jax.random.PRNGKey(42)
        keys = iter(jax.random.split(key, 64))

        # ----- encoder (simplified multi-scale backbone, kaiming init) -----
        enc = []
        cin = 3
        for cout in ENC_CH:
            enc.append((kaiming_uniform(next(keys), cin, (cin, cout)),
                        jnp.zeros((cout,), jnp.float32)))
            cin = cout

        # ----- decoder (simplified Mask2Former decoder, kaiming init) -----
        laterals = []
        for c in ENC_CH:
            laterals.append((kaiming_uniform(next(keys), c, (c, FEAT_CH)),
                             jnp.zeros((FEAT_CH,), jnp.float32)))
        dec = {
            "laterals": laterals,
            "query_embed": 0.02 * jax.random.normal(next(keys),
                                                    (NUM_QUERIES, FEAT_CH),
                                                    jnp.float32),
            "w_qmix": kaiming_uniform(next(keys), FEAT_CH, (FEAT_CH, FEAT_CH)),
            "b_qmix": jnp.zeros((FEAT_CH,), jnp.float32),
        }

        # ----- three semseg heads (xavier init, per initialize_head) -----
        heads = []
        for nc in self.classes:
            heads.append({
                "w_cls": xavier_uniform(next(keys), FEAT_CH, nc + 1,
                                        (FEAT_CH, nc + 1)),
                "b_cls": jnp.zeros((nc + 1,), jnp.float32),
                "w_mask": xavier_uniform(next(keys), FEAT_CH, FEAT_CH,
                                         (FEAT_CH, FEAT_CH)),
                "b_mask": jnp.zeros((FEAT_CH,), jnp.float32),
            })

        self.params = {"encoder": enc, "decoder": dec, "heads": heads}
        self._forward = jax.jit(functools.partial(
            _framework_forward, datasets=args.datasets, classes=self.classes))

    def __call__(self, x1, x2, x3):
        return self._forward(self.params, x1, x2, x3)


# ----------------------------------------------------------------------------
class Args:
    backbone = "resnet50"
    decoder = "mask2former"
    datasets = "sota_sior_fast"
    init_backbone = "none"
    ignore_label = 255


if __name__ == "__main__":
    args = Args()
    model = SemsegPretrnFrameworkPallas(args, classes1=4, classes2=5, classes3=6)

    key = jax.random.PRNGKey(0)
    k1, k2, k3 = jax.random.split(key, 3)
    # NCHW inputs, matching the PyTorch convention.
    x1 = jax.random.normal(k1, (2, 3, 32, 32), jnp.float32)
    x2 = jax.random.normal(k2, (2, 3, 32, 32), jnp.float32)
    x3 = jax.random.normal(k3, (2, 3, 32, 32), jnp.float32)

    out = model(x1, x2, x3)
    out = jax.block_until_ready(out)
    assert out[0].shape == (2, 4, 32, 32)
    assert out[1].shape == (2, 5, 32, 32)
    assert out[2].shape == (2, 6, 32, 32)
    print("KERNEL_OK")
</pallas_src>

<mosaic_0001>
module attributes {stable_mosaic.version = 11 : i64} {
  func.func @_matmul_bias_kernel(%arg0: i32, %arg1: i32, %arg2: i32, %arg3: memref<128x128xbf16, #tpu.memory_space<vmem>>, %arg4: memref<128x128xbf16, #tpu.memory_space<vmem>>, %arg5: memref<1x128xf32, #tpu.memory_space<vmem>>, %arg6: memref<128x128xf32, #tpu.memory_space<vmem>>, %arg7: memref<128x128xf32, #tpu.memory_space<vmem>>) attributes {dimension_semantics = [#tpu.dimension_semantics<parallel>, #tpu.dimension_semantics<parallel>, #tpu.dimension_semantics<arbitrary>], iteration_bounds = array<i64: 1, 1, 1>, scalar_prefetch = 0 : i64, scratch_operands = 1 : i64, tpu.core_type = #tpu.core_type<tc>, window_params = [{transform_indices = @transform_0, window_bounds = array<i64: 128, 128>}, {transform_indices = @transform_1, window_bounds = array<i64: 128, 128>}, {transform_indices = @transform_2, window_bounds = array<i64: 1, 128>}, {transform_indices = @transform_3, window_bounds = array<i64: 128, 128>}]} {
    %c0_i32 = arith.constant 0 : i32
    %0 = arith.cmpi eq, %arg2, %c0_i32 : i32
    %1 = arith.extui %0 : i1 to i32
    %c0_i32_0 = arith.constant 0 : i32
    %2 = arith.cmpi ne, %1, %c0_i32_0 : i32
    scf.if %2 {
      %cst_10 = arith.constant 0.000000e+00 : f32
      %12 = vector.broadcast %cst_10 : f32 to vector<128x128xf32>
      %c0_11 = arith.constant 0 : index
      %c0_12 = arith.constant 0 : index
      %13 = vector.load %arg7[%c0_11, %c0_12] : memref<128x128xf32, #tpu.memory_space<vmem>>, vector<128x128xf32>
      tpu.vector_store %arg7[%c0_11, %c0_12], %12 {strides = array<i32>} : memref<128x128xf32, #tpu.memory_space<vmem>>, vector<128x128xf32>,
    } else {
    }
    %c0 = arith.constant 0 : index
    %c0_1 = arith.constant 0 : index
    %3 = vector.load %arg7[%c0, %c0_1] : memref<128x128xf32, #tpu.memory_space<vmem>>, vector<128x128xf32>
    %c0_2 = arith.constant 0 : index
    %c0_3 = arith.constant 0 : index
    %4 = vector.load %arg3[%c0_2, %c0_3] : memref<128x128xbf16, #tpu.memory_space<vmem>>, vector<128x128xbf16>
    %c0_4 = arith.constant 0 : index
    %c0_5 = arith.constant 0 : index
    %5 = vector.load %arg4[%c0_4, %c0_5] : memref<128x128xbf16, #tpu.memory_space<vmem>>, vector<128x128xbf16>
    %cst = arith.constant dense<0.000000e+00> : vector<128x128xf32>
    %6 = tpu.matmul %4, %5, %cst {dimension_numbers = #tpu.dot_dimension_numbers<[1], [0], [0], [1], [0, 0, 1, 1], [], []>} : vector<128x128xbf16>, vector<128x128xbf16>, vector<128x128xf32> -> vector<128x128xf32>
    %7 = arith.addf %3, %6 : vector<128x128xf32>
    %c0_6 = arith.constant 0 : index
    %c0_7 = arith.constant 0 : index
    %8 = vector.load %arg7[%c0_6, %c0_7] : memref<128x128xf32, #tpu.memory_space<vmem>>, vector<128x128xf32>
    tpu.vector_store %arg7[%c0_6, %c0_7], %7 {strides = array<i32>} : memref<128x128xf32, #tpu.memory_space<vmem>>, vector<128x128xf32>,
    %c0_i32_8 = arith.constant 0 : i32
    %9 = arith.cmpi eq, %arg2, %c0_i32_8 : i32
    %10 = arith.extui %9 : i1 to i32
    %c0_i32_9 = arith.constant 0 : i32
    %11 = arith.cmpi ne, %10, %c0_i32_9 : i32
    scf.if %11 {
      %c0_10 = arith.constant 0 : index
      %c0_11 = arith.constant 0 : index
      %12 = vector.load %arg7[%c0_10, %c0_11] : memref<128x128xf32, #tpu.memory_space<vmem>>, vector<128x128xf32>
      %c0_12 = arith.constant 0 : index
      %c0_13 = arith.constant 0 : index
      %13 = vector.load %arg5[%c0_12, %c0_13] : memref<1x128xf32, #tpu.memory_space<vmem>>, vector<1x128xf32>
      %14 = vector.broadcast %13 : vector<1x128xf32> to vector<128x128xf32>
      %15 = arith.addf %12, %14 : vector<128x128xf32>
      %cst_14 = arith.constant 0.000000e+00 : f32
      %16 = vector.broadcast %cst_14 : f32 to vector<128x128xf32>
      %17 = arith.maximumf %15, %16 : vector<128x128xf32>
      %c0_15 = arith.constant 0 : index
      %c0_16 = arith.constant 0 : index
      %18 = vector.load %arg6[%c0_15, %c0_16] : memref<128x128xf32, #tpu.memory_space<vmem>>, vector<128x128xf32>
      tpu.vector_store %arg6[%c0_15, %c0_16], %17 {strides = array<i32>} : memref<128x128xf32, #tpu.memory_space<vmem>>, vector<128x128xf32>,
    } else {
    }
    return
  }
  func.func @transform_0(%arg0: i32, %arg1: i32, %arg2: i32) -> (i32, i32) {
    %c0_i32 = arith.constant 0 : i32
    return %arg0, %arg2 : i32, i32
  }
  func.func @transform_1(%arg0: i32, %arg1: i32, %arg2: i32) -> (i32, i32) {
    %c0_i32 = arith.constant 0 : i32
    return %arg2, %arg1 : i32, i32
  }
  func.func @transform_2(%arg0: i32, %arg1: i32, %arg2: i32) -> (i32, i32) {
    %c0_i32 = arith.constant 0 : i32
    %c0_i32_0 = arith.constant 0 : i32
    return %c0_i32, %arg1 : i32, i32
  }
  func.func @transform_3(%arg0: i32, %arg1: i32, %arg2: i32) -> (i32, i32) {
    %c0_i32 = arith.constant 0 : i32
    return %arg0, %arg1 : i32, i32
  }
}

module attributes {stable_mosaic.version = 11 : i64} {
  func.func @_matmul_bias_kernel(%arg0: i32, %arg1: i32, %arg2: i32, %arg3: memref<8x128xbf16, #tpu.memory_space<vmem>>, %arg4: memref<128x128xbf16, #tpu.memory_space<vmem>>, %arg5: memref<1x128xf32, #tpu.memory_space<vmem>>, %arg6: memref<8x128xf32, #tpu.memory_space<vmem>>, %arg7: memref<8x128xf32, #tpu.memory_space<vmem>>) attributes {dimension_semantics = [#tpu.dimension_semantics<parallel>, #tpu.dimension_semantics<parallel>, #tpu.dimension_semantics<arbitrary>], iteration_bounds = array<i64: 1, 1, 1>, scalar_prefetch = 0 : i64, scratch_operands = 1 : i64, tpu.core_type = #tpu.core_type<tc>, window_params = [{transform_indices = @transform_0, window_bounds = array<i64: 8, 128>}, {transform_indices = @transform_1, window_bounds = array<i64: 128, 128>}, {transform_indices = @transform_2, window_bounds = array<i64: 1, 128>}, {transform_indices = @transform_3, window_bounds = array<i64: 8, 128>}]} {
    %c0_i32 = arith.constant 0 : i32
    %0 = arith.cmpi eq, %arg2, %c0_i32 : i32
    %1 = arith.extui %0 : i1 to i32
    %c0_i32_0 = arith.constant 0 : i32
    %2 = arith.cmpi ne, %1, %c0_i32_0 : i32
    scf.if %2 {
      %cst_10 = arith.constant 0.000000e+00 : f32
      %12 = vector.broadcast %cst_10 : f32 to vector<8x128xf32>
      %c0_11 = arith.constant 0 : index
      %c0_12 = arith.constant 0 : index
      %13 = vector.load %arg7[%c0_11, %c0_12] : memref<8x128xf32, #tpu.memory_space<vmem>>, vector<8x128xf32>
      tpu.vector_store %arg7[%c0_11, %c0_12], %12 {strides = array<i32>} : memref<8x128xf32, #tpu.memory_space<vmem>>, vector<8x128xf32>,
    } else {
    }
    %c0 = arith.constant 0 : index
    %c0_1 = arith.constant 0 : index
    %3 = vector.load %arg7[%c0, %c0_1] : memref<8x128xf32, #tpu.memory_space<vmem>>, vector<8x128xf32>
    %c0_2 = arith.constant 0 : index
    %c0_3 = arith.constant 0 : index
    %4 = vector.load %arg3[%c0_2, %c0_3] : memref<8x128xbf16, #tpu.memory_space<vmem>>, vector<8x128xbf16>
    %c0_4 = arith.constant 0 : index
    %c0_5 = arith.constant 0 : index
    %5 = vector.load %arg4[%c0_4, %c0_5] : memref<128x128xbf16, #tpu.memory_space<vmem>>, vector<128x128xbf16>
    %cst = arith.constant dense<0.000000e+00> : vector<8x128xf32>
    %6 = tpu.matmul %4, %5, %cst {dimension_numbers = #tpu.dot_dimension_numbers<[1], [0], [0], [1], [0, 0, 1, 1], [], []>} : vector<8x128xbf16>, vector<128x128xbf16>, vector<8x128xf32> -> vector<8x128xf32>
    %7 = arith.addf %3, %6 : vector<8x128xf32>
    %c0_6 = arith.constant 0 : index
    %c0_7 = arith.constant 0 : index
    %8 = vector.load %arg7[%c0_6, %c0_7] : memref<8x128xf32, #tpu.memory_space<vmem>>, vector<8x128xf32>
    tpu.vector_store %arg7[%c0_6, %c0_7], %7 {strides = array<i32>} : memref<8x128xf32, #tpu.memory_space<vmem>>, vector<8x128xf32>,
    %c0_i32_8 = arith.constant 0 : i32
    %9 = arith.cmpi eq, %arg2, %c0_i32_8 : i32
    %10 = arith.extui %9 : i1 to i32
    %c0_i32_9 = arith.constant 0 : i32
    %11 = arith.cmpi ne, %10, %c0_i32_9 : i32
    scf.if %11 {
      %c0_10 = arith.constant 0 : index
      %c0_11 = arith.constant 0 : index
      %12 = vector.load %arg7[%c0_10, %c0_11] : memref<8x128xf32, #tpu.memory_space<vmem>>, vector<8x128xf32>
      %c0_12 = arith.constant 0 : index
      %c0_13 = arith.constant 0 : index
      %13 = vector.load %arg5[%c0_12, %c0_13] : memref<1x128xf32, #tpu.memory_space<vmem>>, vector<1x128xf32>
      %14 = vector.broadcast %13 : vector<1x128xf32> to vector<8x128xf32>
      %15 = arith.addf %12, %14 : vector<8x128xf32>
      %cst_14 = arith.constant 0.000000e+00 : f32
      %16 = vector.broadcast %cst_14 : f32 to vector<8x128xf32>
      %17 = arith.maximumf %15, %16 : vector<8x128xf32>
      %c0_15 = arith.constant 0 : index
      %c0_16 = arith.constant 0 : index
      %18 = vector.load %arg6[%c0_15, %c0_16] : memref<8x128xf32, #tpu.memory_space<vmem>>, vector<8x128xf32>
      tpu.vector_store %arg6[%c0_15, %c0_16], %17 {strides = array<i32>} : memref<8x128xf32, #tpu.memory_space<vmem>>, vector<8x128xf32>,
    } else {
    }
    return
  }
  func.func @transform_0(%arg0: i32, %arg1: i32, %arg2: i32) -> (i32, i32) {
    %c0_i32 = arith.constant 0 : i32
    return %arg0, %arg2 : i32, i32
  }
  func.func @transform_1(%arg0: i32, %arg1: i32, %arg2: i32) -> (i32, i32) {
    %c0_i32 = arith.constant 0 : i32
    return %arg2, %arg1 : i32, i32
  }
  func.func @transform_2(%arg0: i32, %arg1: i32, %arg2: i32) -> (i32, i32) {
    %c0_i32 = arith.constant 0 : i32
    %c0_i32_0 = arith.constant 0 : i32
    return %c0_i32, %arg1 : i32, i32
  }
  func.func @transform_3(%arg0: i32, %arg1: i32, %arg2: i32) -> (i32, i32) {
    %c0_i32 = arith.constant 0 : i32
    return %arg0, %arg1 : i32, i32
  }
}

module attributes {stable_mosaic.version = 11 : i64} {
  func.func @_matmul_bias_kernel(%arg0: i32, %arg1: i32, %arg2: i32, %arg3: memref<32x128xbf16, #tpu.memory_space<vmem>>, %arg4: memref<128x128xbf16, #tpu.memory_space<vmem>>, %arg5: memref<1x128xf32, #tpu.memory_space<vmem>>, %arg6: memref<32x128xf32, #tpu.memory_space<vmem>>, %arg7: memref<32x128xf32, #tpu.memory_space<vmem>>) attributes {dimension_semantics = [#tpu.dimension_semantics<parallel>, #tpu.dimension_semantics<parallel>, #tpu.dimension_semantics<arbitrary>], iteration_bounds = array<i64: 1, 1, 1>, scalar_prefetch = 0 : i64, scratch_operands = 1 : i64, tpu.core_type = #tpu.core_type<tc>, window_params = [{transform_indices = @transform_0, window_bounds = array<i64: 32, 128>}, {transform_indices = @transform_1, window_bounds = array<i64: 128, 128>}, {transform_indices = @transform_2, window_bounds = array<i64: 1, 128>}, {transform_indices = @transform_3, window_bounds = array<i64: 32, 128>}]} {
    %c0_i32 = arith.constant 0 : i32
    %0 = arith.cmpi eq, %arg2, %c0_i32 : i32
    %1 = arith.extui %0 : i1 to i32
    %c0_i32_0 = arith.constant 0 : i32
    %2 = arith.cmpi ne, %1, %c0_i32_0 : i32
    scf.if %2 {
      %cst_10 = arith.constant 0.000000e+00 : f32
      %12 = vector.broadcast %cst_10 : f32 to vector<32x128xf32>
      %c0_11 = arith.constant 0 : index
      %c0_12 = arith.constant 0 : index
      %13 = vector.load %arg7[%c0_11, %c0_12] : memref<32x128xf32, #tpu.memory_space<vmem>>, vector<32x128xf32>
      tpu.vector_store %arg7[%c0_11, %c0_12], %12 {strides = array<i32>} : memref<32x128xf32, #tpu.memory_space<vmem>>, vector<32x128xf32>,
    } else {
    }
    %c0 = arith.constant 0 : index
    %c0_1 = arith.constant 0 : index
    %3 = vector.load %arg7[%c0, %c0_1] : memref<32x128xf32, #tpu.memory_space<vmem>>, vector<32x128xf32>
    %c0_2 = arith.constant 0 : index
    %c0_3 = arith.constant 0 : index
    %4 = vector.load %arg3[%c0_2, %c0_3] : memref<32x128xbf16, #tpu.memory_space<vmem>>, vector<32x128xbf16>
    %c0_4 = arith.constant 0 : index
    %c0_5 = arith.constant 0 : index
    %5 = vector.load %arg4[%c0_4, %c0_5] : memref<128x128xbf16, #tpu.memory_space<vmem>>, vector<128x128xbf16>
    %cst = arith.constant dense<0.000000e+00> : vector<32x128xf32>
    %6 = tpu.matmul %4, %5, %cst {dimension_numbers = #tpu.dot_dimension_numbers<[1], [0], [0], [1], [0, 0, 1, 1], [], []>} : vector<32x128xbf16>, vector<128x128xbf16>, vector<32x128xf32> -> vector<32x128xf32>
    %7 = arith.addf %3, %6 : vector<32x128xf32>
    %c0_6 = arith.constant 0 : index
    %c0_7 = arith.constant 0 : index
    %8 = vector.load %arg7[%c0_6, %c0_7] : memref<32x128xf32, #tpu.memory_space<vmem>>, vector<32x128xf32>
    tpu.vector_store %arg7[%c0_6, %c0_7], %7 {strides = array<i32>} : memref<32x128xf32, #tpu.memory_space<vmem>>, vector<32x128xf32>,
    %c0_i32_8 = arith.constant 0 : i32
    %9 = arith.cmpi eq, %arg2, %c0_i32_8 : i32
    %10 = arith.extui %9 : i1 to i32
    %c0_i32_9 = arith.constant 0 : i32
    %11 = arith.cmpi ne, %10, %c0_i32_9 : i32
    scf.if %11 {
      %c0_10 = arith.constant 0 : index
      %c0_11 = arith.constant 0 : index
      %12 = vector.load %arg7[%c0_10, %c0_11] : memref<32x128xf32, #tpu.memory_space<vmem>>, vector<32x128xf32>
      %c0_12 = arith.constant 0 : index
      %c0_13 = arith.constant 0 : index
      %13 = vector.load %arg5[%c0_12, %c0_13] : memref<1x128xf32, #tpu.memory_space<vmem>>, vector<1x128xf32>
      %14 = vector.broadcast %13 : vector<1x128xf32> to vector<32x128xf32>
      %15 = arith.addf %12, %14 : vector<32x128xf32>
      %cst_14 = arith.constant 0.000000e+00 : f32
      %16 = vector.broadcast %cst_14 : f32 to vector<32x128xf32>
      %17 = arith.maximumf %15, %16 : vector<32x128xf32>
      %c0_15 = arith.constant 0 : index
      %c0_16 = arith.constant 0 : index
      %18 = vector.load %arg6[%c0_15, %c0_16] : memref<32x128xf32, #tpu.memory_space<vmem>>, vector<32x128xf32>
      tpu.vector_store %arg6[%c0_15, %c0_16], %17 {strides = array<i32>} : memref<32x128xf32, #tpu.memory_space<vmem>>, vector<32x128xf32>,
    } else {
    }
    return
  }
  func.func @transform_0(%arg0: i32, %arg1: i32, %arg2: i32) -> (i32, i32) {
    %c0_i32 = arith.constant 0 : i32
    return %arg0, %arg2 : i32, i32
  }
  func.func @transform_1(%arg0: i32, %arg1: i32, %arg2: i32) -> (i32, i32) {
    %c0_i32 = arith.constant 0 : i32
    return %arg2, %arg1 : i32, i32
  }
  func.func @transform_2(%arg0: i32, %arg1: i32, %arg2: i32) -> (i32, i32) {
    %c0_i32 = arith.constant 0 : i32
    %c0_i32_0 = arith.constant 0 : i32
    return %c0_i32, %arg1 : i32, i32
  }
  func.func @transform_3(%arg0: i32, %arg1: i32, %arg2: i32) -> (i32, i32) {
    %c0_i32 = arith.constant 0 : i32
    return %arg0, %arg1 : i32, i32
  }
}

module attributes {stable_mosaic.version = 11 : i64} {
  func.func @_head_predict_kernel(%arg0: i32, %arg1: memref<1x16x32xbf16, #tpu.memory_space<vmem>>, %arg2: memref<1x64x32xbf16, #tpu.memory_space<vmem>>, %arg3: memref<32x128xbf16, #tpu.memory_space<vmem>>, %arg4: memref<1x128xf32, #tpu.memory_space<vmem>>, %arg5: memref<32x32xbf16, #tpu.memory_space<vmem>>, %arg6: memref<1x32xf32, #tpu.memory_space<vmem>>, %arg7: memref<1x8x64xf32, #tpu.memory_space<vmem>>) attributes {dimension_semantics = [#tpu.dimension_semantics<parallel>], iteration_bounds = array<i64: 2>, scalar_prefetch = 0 : i64, scratch_operands = 0 : i64, tpu.core_type = #tpu.core_type<tc>, window_params = [{transform_indices = @transform_0, window_bounds = array<i64: 1, 16, 32>}, {transform_indices = @transform_1, window_bounds = array<i64: 1, 64, 32>}, {pipeline_mode = #tpu.pipeline_mode<synchronous>, transform_indices = @transform_2, window_bounds = array<i64: 32, 128>}, {pipeline_mode = #tpu.pipeline_mode<synchronous>, transform_indices = @transform_3, window_bounds = array<i64: 1, 128>}, {pipeline_mode = #tpu.pipeline_mode<synchronous>, transform_indices = @transform_4, window_bounds = array<i64: 32, 32>}, {pipeline_mode = #tpu.pipeline_mode<synchronous>, transform_indices = @transform_5, window_bounds = array<i64: 1, 32>}, {transform_indices = @transform_6, window_bounds = array<i64: 1, 8, 64>}]} {
    %c0 = arith.constant 0 : index
    %c0_0 = arith.constant 0 : index
    %c0_1 = arith.constant 0 : index
    %0 = vector.load %arg1[%c0, %c0_0, %c0_1] : memref<1x16x32xbf16, #tpu.memory_space<vmem>>, vector<1x16x32xbf16>
    %1 = vector.shape_cast %0 : vector<1x16x32xbf16> to vector<16x32xbf16>
    %c0_2 = arith.constant 0 : index
    %c0_3 = arith.constant 0 : index
    %2 = vector.load %arg3[%c0_2, %c0_3] : memref<32x128xbf16, #tpu.memory_space<vmem>>, vector<32x128xbf16>
    %cst = arith.constant dense<0.000000e+00> : vector<16x128xf32>
    %3 = tpu.matmul %1, %2, %cst {dimension_numbers = #tpu.dot_dimension_numbers<[1], [0], [0], [1], [0, 0, 1, 1], [], []>} : vector<16x32xbf16>, vector<32x128xbf16>, vector<16x128xf32> -> vector<16x128xf32>
    %c0_4 = arith.constant 0 : index
    %c0_5 = arith.constant 0 : index
    %4 = vector.load %arg4[%c0_4, %c0_5] : memref<1x128xf32, #tpu.memory_space<vmem>>, vector<1x128xf32>
    %5 = vector.broadcast %4 : vector<1x128xf32> to vector<16x128xf32>
    %6 = arith.addf %3, %5 : vector<16x128xf32>
    %c0_6 = arith.constant 0 : index
    %c0_7 = arith.constant 0 : index
    %7 = vector.load %arg5[%c0_6, %c0_7] : memref<32x32xbf16, #tpu.memory_space<vmem>>, vector<32x32xbf16>
    %cst_8 = arith.constant dense<0.000000e+00> : vector<16x32xf32>
    %8 = tpu.matmul %1, %7, %cst_8 {dimension_numbers = #tpu.dot_dimension_numbers<[1], [0], [0], [1], [0, 0, 1, 1], [], []>} : vector<16x32xbf16>, vector<32x32xbf16>, vector<16x32xf32> -> vector<16x32xf32>
    %c0_9 = arith.constant 0 : index
    %c0_10 = arith.constant 0 : index
    %9 = vector.load %arg6[%c0_9, %c0_10] : memref<1x32xf32, #tpu.memory_space<vmem>>, vector<1x32xf32>
    %10 = vector.broadcast %9 : vector<1x32xf32> to vector<16x32xf32>
    %11 = arith.addf %8, %10 : vector<16x32xf32>
    %12 = arith.truncf %11 : vector<16x32xf32> to vector<16x32xbf16>
    %c0_11 = arith.constant 0 : index
    %c0_12 = arith.constant 0 : index
    %c0_13 = arith.constant 0 : index
    %13 = vector.load %arg2[%c0_11, %c0_12, %c0_13] : memref<1x64x32xbf16, #tpu.memory_space<vmem>>, vector<1x64x32xbf16>
    %14 = vector.shape_cast %13 : vector<1x64x32xbf16> to vector<64x32xbf16>
    %cst_14 = arith.constant dense<0.000000e+00> : vector<16x64xf32>
    %15 = tpu.matmul %12, %14, %cst_14 {dimension_numbers = #tpu.dot_dimension_numbers<[1], [1], [0], [0], [0, 0, 1, 0], [], []>} : vector<16x32xbf16>, vector<64x32xbf16>, vector<16x64xf32> -> vector<16x64xf32>
    %cst_15 = arith.constant dense<0xFF800000> : vector<16xf32>
    %16 = vector.multi_reduction <maximumf>, %6, %cst_15 [1] : vector<16x128xf32> to vector<16xf32>
    %17 = vector.shape_cast %16 : vector<16xf32> to vector<16x1xf32>
    %18 = vector.broadcast %17 : vector<16x1xf32> to vector<16x128xf32>
    %19 = arith.subf %6, %18 : vector<16x128xf32>
    %20 = math.exp %19 : vector<16x128xf32>
    %cst_16 = arith.constant dense<0.000000e+00> : vector<16xf32>
    %21 = vector.multi_reduction <add>, %20, %cst_16 [1] : vector<16x128xf32> to vector<16xf32>
    %22 = vector.shape_cast %21 : vector<16xf32> to vector<16x1xf32>
    %23 = vector.broadcast %22 : vector<16x1xf32> to vector<16x128xf32>
    %24 = arith.divf %20, %23 : vector<16x128xf32>
    %25 = vector.extract_strided_slice %24 {offsets = [0, 0], sizes = [16, 8], strides = [1, 1]} : vector<16x128xf32> to vector<16x8xf32>
    %26 = arith.negf %15 : vector<16x64xf32>
    %27 = math.exp %26 : vector<16x64xf32>
    %cst_17 = arith.constant 1.000000e+00 : f32
    %28 = vector.broadcast %cst_17 : f32 to vector<16x64xf32>
    %29 = arith.addf %28, %27 : vector<16x64xf32>
    %30 = arith.divf %28, %29 : vector<16x64xf32>
    %cst_18 = arith.constant dense<0.000000e+00> : vector<8x64xf32>
    %31 = tpu.matmul %25, %30, %cst_18 {dimension_numbers = #tpu.dot_dimension_numbers<[0], [0], [1], [1], [0, 1, 1, 1], [], []>} : vector<16x8xf32>, vector<16x64xf32>, vector<8x64xf32> -> vector<8x64xf32>
    %c0_19 = arith.constant 0 : index
    %c0_20 = arith.constant 0 : index
    %c0_21 = arith.constant 0 : index
    %32 = vector.load %arg7[%c0_19, %c0_20, %c0_21] : memref<1x8x64xf32, #tpu.memory_space<vmem>>, vector<1x8x64xf32>
    %33 = vector.shape_cast %32 : vector<1x8x64xf32> to vector<8x64xf32>
    %34 = vector.shape_cast %31 : vector<8x64xf32> to vector<1x8x64xf32>
    tpu.vector_store %arg7[%c0_19, %c0_20, %c0_21], %34 {strides = array<i32>} : memref<1x8x64xf32, #tpu.memory_space<vmem>>, vector<1x8x64xf32>,
    return
  }
  func.func @transform_0(%arg0: i32) -> (i32, i32, i32) {
    %c0_i32 = arith.constant 0 : i32
    %c0_i32_0 = arith.constant 0 : i32
    %c0_i32_1 = arith.constant 0 : i32
    return %arg0, %c0_i32, %c0_i32_0 : i32, i32, i32
  }
  func.func @transform_1(%arg0: i32) -> (i32, i32, i32) {
    %c0_i32 = arith.constant 0 : i32
    %c0_i32_0 = arith.constant 0 : i32
    %c0_i32_1 = arith.constant 0 : i32
    return %arg0, %c0_i32, %c0_i32_0 : i32, i32, i32
  }
  func.func @transform_2(%arg0: i32) -> (i32, i32) {
    %c0_i32 = arith.constant 0 : i32
    %c0_i32_0 = arith.constant 0 : i32
    %c0_i32_1 = arith.constant 0 : i32
    return %c0_i32, %c0_i32_0 : i32, i32
  }
  func.func @transform_3(%arg0: i32) -> (i32, i32) {
    %c0_i32 = arith.constant 0 : i32
    %c0_i32_0 = arith.constant 0 : i32
    %c0_i32_1 = arith.constant 0 : i32
    return %c0_i32, %c0_i32_0 : i32, i32
  }
  func.func @transform_4(%arg0: i32) -> (i32, i32) {
    %c0_i32 = arith.constant 0 : i32
    %c0_i32_0 = arith.constant 0 : i32
    %c0_i32_1 = arith.constant 0 : i32
    return %c0_i32, %c0_i32_0 : i32, i32
  }
  func.func @transform_5(%arg0: i32) -> (i32, i32) {
    %c0_i32 = arith.constant 0 : i32
    %c0_i32_0 = arith.constant 0 : i32
    %c0_i32_1 = arith.constant 0 : i32
    return %c0_i32, %c0_i32_0 : i32, i32
  }
  func.func @transform_6(%arg0: i32) -> (i32, i32, i32) {
    %c0_i32 = arith.constant 0 : i32
    %c0_i32_0 = arith.constant 0 : i32
    %c0_i32_1 = arith.constant 0 : i32
    return %arg0, %c0_i32, %c0_i32_0 : i32, i32, i32
  }
}

</mosaic_0001>

<llo_original>
// kernel: _framework_forward.32
$region0: #{_framework_forward.32}
  #allocation0 [shape = 'u32[]', space=smem, size = 0x4, offset = 0x4, fixed_abs, tag = 'smem constant byte address 0x4 - core index']
  #allocation1 [shape = 'u32[144,128]{1,0:T(1,128)}', space=vmem, size = 0x12000, scoped, tag = 'internal scratch']
  #allocation2 [shape = 'f32[128,128]{1,0:T(8,128)}', space=vmem, size = 0x10000, scoped, tag = 'scratch operand']
  %s0 = inlined_call_operand.vmem [shape: bf16[128,128], index: 0, kind: input, shape index: {}]
  %s1 = inlined_call_operand.vmem [shape: bf16[128,128], index: 1, kind: input, shape index: {}]
  %s2 = inlined_call_operand.vmem [shape: f32[1,128], index: 2, kind: input, shape index: {}]
  %s3 = inlined_call_operand.vmem [shape: f32[128,128], index: 3, kind: output, shape index: {}]
  %s4 = sld [smem:[#allocation0]]
  $region30: #{_framework_forward.32} parent=0
    _
  %s6 = ssub.s32 1, %s4
  %s7 = scalar_select 0, %s6, %s4
  // Predicated region
  $region2: #{_framework_forward.32} parent=0 // pred_check
    _
  $region3: #{_framework_forward.32} parent=0 // pred_check_branch
    %9 = sbr.rel (0) target = $region5
  $region4: #{_framework_forward.32} parent=0 // pred_region
    _
  $region5: #{_framework_forward.32} parent=0 // pred_fallthru
    _
  // Predicated region
  $region6: #{_framework_forward.32} parent=0 // pred_check
    _
  $region7: #{_framework_forward.32} parent=0 // pred_check_branch
    %11 = sbr.rel (0) target = $region9
  $region8: #{_framework_forward.32} parent=0 // pred_region
    _
  $region9: #{_framework_forward.32} parent=0 // pred_fallthru
    _
  // Predicated region
  $region10: #{_framework_forward.32} parent=0 // pred_check
    _
  $region11: #{_framework_forward.32} parent=0 // pred_check_branch
    %13 = sbr.rel (0) target = $region13
  $region12: #{_framework_forward.32} parent=0 // pred_region
    _
  $region13: #{_framework_forward.32} parent=0 // pred_fallthru
    _
  %p15 = scmp.eq.s32.totalorder 0, 0
  // Predicated region
  $region14: #{_framework_forward.32} parent=0 // pred_check
    %p16 = pneg %p15
  $region15: #{_framework_forward.32} parent=0 // pred_check_branch
    %18 = sbr.rel (%p16) target = $region17
  $region16: #{_framework_forward.32} parent=0 // pred_region
    %19 = vst [vmem:[#allocation2] sm:$0xff] 0.0
    %20 = vst [vmem:[#allocation2 + $0x8] sm:$0xff] 0.0
    %21 = vst [vmem:[#allocation2 + $0x10] sm:$0xff] 0.0
    %22 = vst [vmem:[#allocation2 + $0x18] sm:$0xff] 0.0
    %23 = vst [vmem:[#allocation2 + $0x20] sm:$0xff] 0.0
    %24 = vst [vmem:[#allocation2 + $0x28] sm:$0xff] 0.0
    %25 = vst [vmem:[#allocation2 + $0x30] sm:$0xff] 0.0
    %26 = vst [vmem:[#allocation2 + $0x38] sm:$0xff] 0.0
    %27 = vst [vmem:[#allocation2 + $0x40] sm:$0xff] 0.0
    %28 = vst [vmem:[#allocation2 + $0x48] sm:$0xff] 0.0
    %29 = vst [vmem:[#allocation2 + $0x50] sm:$0xff] 0.0
    %30 = vst [vmem:[#allocation2 + $0x58] sm:$0xff] 0.0
    %31 = vst [vmem:[#allocation2 + $0x60] sm:$0xff] 0.0
    %32 = vst [vmem:[#allocation2 + $0x68] sm:$0xff] 0.0
    %33 = vst [vmem:[#allocation2 + $0x70] sm:$0xff] 0.0
    %34 = vst [vmem:[#allocation2 + $0x78] sm:$0xff] 0.0
  $region17: #{_framework_forward.32} parent=0 // pred_fallthru
    _
  %v35 = vld [vmem:[#allocation2] sm:$0xff]
  %v36 = vld [vmem:[#allocation2 + $0x8] sm:$0xff]
  %v37 = vld [vmem:[#allocation2 + $0x10] sm:$0xff]
  %v38 = vld [vmem:[#allocation2 + $0x18] sm:$0xff]
  %v39 = vld [vmem:[#allocation2 + $0x20] sm:$0xff]
  %v40 = vld [vmem:[#allocation2 + $0x28] sm:$0xff]
  %v41 = vld [vmem:[#allocation2 + $0x30] sm:$0xff]
  %v42 = vld [vmem:[#allocation2 + $0x38] sm:$0xff]
  %v43 = vld [vmem:[#allocation2 + $0x40] sm:$0xff]
  %v44 = vld [vmem:[#allocation2 + $0x48] sm:$0xff]
  %v45 = vld [vmem:[#allocation2 + $0x50] sm:$0xff]
  %v46 = vld [vmem:[#allocation2 + $0x58] sm:$0xff]
  %v47 = vld [vmem:[#allocation2 + $0x60] sm:$0xff]
  %v48 = vld [vmem:[#allocation2 + $0x68] sm:$0xff]
  %v49 = vld [vmem:[#allocation2 + $0x70] sm:$0xff]
  %v50 = vld [vmem:[#allocation2 + $0x78] sm:$0xff]
  %v51 = vld [vmem:[%s0] sm:$0xf]
  %v52 = vld [vmem:[%s0 + $0x4] sm:$0xf]
  %v53 = vld [vmem:[%s0 + $0x8] sm:$0xf]
  %v54 = vld [vmem:[%s0 + $0xc] sm:$0xf]
  %v55 = vld [vmem:[%s0 + $0x10] sm:$0xf]
  %v56 = vld [vmem:[%s0 + $0x14] sm:$0xf]
  %v57 = vld [vmem:[%s0 + $0x18] sm:$0xf]
  %v58 = vld [vmem:[%s0 + $0x1c] sm:$0xf]
  %v59 = vld [vmem:[%s0 + $0x20] sm:$0xf]
  %v60 = vld [vmem:[%s0 + $0x24] sm:$0xf]
  %v61 = vld [vmem:[%s0 + $0x28] sm:$0xf]
  %v62 = vld [vmem:[%s0 + $0x2c] sm:$0xf]
  %v63 = vld [vmem:[%s0 + $0x30] sm:$0xf]
  %v64 = vld [vmem:[%s0 + $0x34] sm:$0xf]
  %v65 = vld [vmem:[%s0 + $0x38] sm:$0xf]
  %v66 = vld [vmem:[%s0 + $0x3c] sm:$0xf]
  %v67 = vld [vmem:[%s1] sm:$0xf]
  %v68 = vld [vmem:[%s1 + $0x4] sm:$0xf]
  %v69 = vld [vmem:[%s1 + $0x8] sm:$0xf]
  %v70 = vld [vmem:[%s1 + $0xc] sm:$0xf]
  %v71 = vld [vmem:[%s1 + $0x10] sm:$0xf]
  %v72 = vld [vmem:[%s1 + $0x14] sm:$0xf]
  %v73 = vld [vmem:[%s1 + $0x18] sm:$0xf]
  %v74 = vld [vmem:[%s1 + $0x1c] sm:$0xf]
  %v75 = vld [vmem:[%s1 + $0x20] sm:$0xf]
  %v76 = vld [vmem:[%s1 + $0x24] sm:$0xf]
  %v77 = vld [vmem:[%s1 + $0x28] sm:$0xf]
  %v78 = vld [vmem:[%s1 + $0x2c] sm:$0xf]
  %v79 = vld [vmem:[%s1 + $0x30] sm:$0xf]
  %v80 = vld [vmem:[%s1 + $0x34] sm:$0xf]
  %v81 = vld [vmem:[%s1 + $0x38] sm:$0xf]
  %v82 = vld [vmem:[%s1 + $0x3c] sm:$0xf]
  %v99 = vunpack.c.l.b16 %v51
  %v100 = vunpack.c.l.b16 %v52
  %v101 = vunpack.c.l.b16 %v53
  %v102 = vunpack.c.l.b16 %v54
  %v103 = vunpack.c.l.b16 %v55
  %v104 = vunpack.c.l.b16 %v56
  %v105 = vunpack.c.l.b16 %v57
  %v106 = vunpack.c.l.b16 %v58
  %v107 = vunpack.c.l.b16 %v59
  %v108 = vunpack.c.l.b16 %v60
  %v109 = vunpack.c.l.b16 %v61
  %v110 = vunpack.c.l.b16 %v62
  %v111 = vunpack.c.l.b16 %v63
  %v112 = vunpack.c.l.b16 %v64
  %v113 = vunpack.c.l.b16 %v65
  %v114 = vunpack.c.l.b16 %v66
  %v115 = vpack.c.b16 %v100, %v99
  %v116 = vpack.c.b16 %v102, %v101
  %v117 = vpack.c.b16 %v104, %v103
  %v118 = vpack.c.b16 %v106, %v105
  %v119 = vpack.c.b16 %v108, %v107
  %v120 = vpack.c.b16 %v110, %v109
  %v121 = vpack.c.b16 %v112, %v111
  %v122 = vpack.c.b16 %v114, %v113
  %v147 = vunpack.c.l.b16 %v67
  %v148 = vunpack.c.l.b16 %v68
  %v149 = vunpack.c.l.b16 %v69
  %v150 = vunpack.c.l.b16 %v70
  %v151 = vunpack.c.l.b16 %v71
  %v152 = vunpack.c.l.b16 %v72
  %v153 = vunpack.c.l.b16 %v73
  %v154 = vunpack.c.l.b16 %v74
  %v155 = vunpack.c.l.b16 %v75
  %v156 = vunpack.c.l.b16 %v76
  %v157 = vunpack.c.l.b16 %v77
  %v158 = vunpack.c.l.b16 %v78
  %v159 = vunpack.c.l.b16 %v79
  %v160 = vunpack.c.l.b16 %v80
  %v161 = vunpack.c.l.b16 %v81
  %v162 = vunpack.c.l.b16 %v82
  %v163 = vpack.c.b16 %v148, %v147
  %v164 = vpack.c.b16 %v150, %v149
  %v165 = vpack.c.b16 %v152, %v151
  %v166 = vpack.c.b16 %v154, %v153
  %v167 = vpack.c.b16 %v156, %v155
  %v168 = vpack.c.b16 %v158, %v157
  %v169 = vpack.c.b16 %v160, %v159
  %v170 = vpack.c.b16 %v162, %v161
  %179 = vmatprep.subr.bf16.mxu0 0
  %180 = vmatpush1.bf16.msra.mxu0 %v170
  %181 = vmatprep.subr.bf16.mxu0 0
  %182 = vmatpush1.bf16.msra.mxu0 %v169
  %183 = vmatprep.subr.bf16.mxu0 0
  %184 = vmatpush1.bf16.msra.mxu0 %v168
  %185 = vmatprep.subr.bf16.mxu0 0
  %186 = vmatpush1.bf16.msra.mxu0 %v167
  %187 = vmatprep.subr.bf16.mxu0 0
  %188 = vmatpush1.bf16.msra.mxu0 %v166
  %189 = vmatprep.subr.bf16.mxu0 0
  %190 = vmatpush1.bf16.msra.mxu0 %v165
  %191 = vmatprep.subr.bf16.mxu0 0
  %192 = vmatpush1.bf16.msra.mxu0 %v164
  %193 = vmatprep.subr.bf16.mxu0 0
  %194 = vmatpush1.bf16.msra.mxu0 %v163
  %195 = vmatprep.subr.bf16.mxu0 0
  %196 = vmatpush2.bf16.msra.mxu0 0
  %197 = vmatprep.subr.bf16.mxu0 0
  %198 = vmatpush2.bf16.msra.mxu0 0
  %199 = vmatprep.subr.bf16.mxu0 0
  %200 = vmatpush2.bf16.msra.mxu0 0
  %201 = vmatprep.subr.bf16.mxu0 0
  %202 = vmatpush2.bf16.msra.mxu0 0
  %203 = vmatprep.subr.bf16.mxu0 0
  %204 = vmatpush2.bf16.msra.mxu0 0
  %205 = vmatprep.subr.bf16.mxu0 0
  %206 = vmatpush2.bf16.msra.mxu0 0
  %207 = vmatprep.subr.bf16.mxu0 0
  %208 = vmatpush2.bf16.msra.mxu0 0
  %209 = vmatprep.subr.bf16.mxu0 0
  %210 = vmatpush2.bf16.msra.mxu0 0
  %211 = vmatprep.mubr.bf16.mxu0 0
  %212 = vmatmul.mubr.bf16.gmra.mxu0 %v115
  %v213 = vpop.f32.mrf.mxu0
  %v214 = vadd.f32 0.0, %v213
  %v215 = vpop.f32.mrf.mxu0
  %v216 = vpop.f32.mrf.mxu0
  %v217 = vadd.f32 0.0, %v216
  %v218 = vpop.f32.mrf.mxu0
  %219 = vmatprep.mubr.bf16.mxu0 0
  %220 = vmatmul.mubr.bf16.gmra.mxu0 %v116
  %v221 = vpop.f32.mrf.mxu0
  %v222 = vadd.f32 0.0, %v221
  %v223 = vpop.f32.mrf.mxu0
  %v224 = vpop.f32.mrf.mxu0
  %v225 = vadd.f32 0.0, %v224
  %v226 = vpop.f32.mrf.mxu0
  %227 = vmatprep.mubr.bf16.mxu0 0
  %228 = vmatmul.mubr.bf16.gmra.mxu0 %v117
  %v229 = vpop.f32.mrf.mxu0
  %v230 = vadd.f32 0.0, %v229
  %v231 = vpop.f32.mrf.mxu0
  %v232 = vpop.f32.mrf.mxu0
  %v233 = vadd.f32 0.0, %v232
  %v234 = vpop.f32.mrf.mxu0
  %235 = vmatprep.mubr.bf16.mxu0 0
  %236 = vmatmul.mubr.bf16.gmra.mxu0 %v118
  %v237 = vpop.f32.mrf.mxu0
  %v238 = vadd.f32 0.0, %v237
  %v239 = vpop.f32.mrf.mxu0
  %v240 = vpop.f32.mrf.mxu0
  %v241 = vadd.f32 0.0, %v240
  %v242 = vpop.f32.mrf.mxu0
  %243 = vmatprep.mubr.bf16.mxu0 0
  %244 = vmatmul.mubr.bf16.gmra.mxu0 %v119
  %v245 = vpop.f32.mrf.mxu0
  %v246 = vadd.f32 0.0, %v245
  %v247 = vpop.f32.mrf.mxu0
  %v248 = vpop.f32.mrf.mxu0
  %v249 = vadd.f32 0.0, %v248
  %v250 = vpop.f32.mrf.mxu0
  %251 = vmatprep.mubr.bf16.mxu0 0
  %252 = vmatmul.mubr.bf16.gmra.mxu0 %v120
  %v253 = vpop.f32.mrf.mxu0
  %v254 = vadd.f32 0.0, %v253
  %v255 = vpop.f32.mrf.mxu0
  %v256 = vpop.f32.mrf.mxu0
  %v257 = vadd.f32 0.0, %v256
  %v258 = vpop.f32.mrf.mxu0
  %259 = vmatprep.mubr.bf16.mxu0 0
  %260 = vmatmul.mubr.bf16.gmra.mxu0 %v121
  %v261 = vpop.f32.mrf.mxu0
  %v262 = vadd.f32 0.0, %v261
  %v263 = vpop.f32.mrf.mxu0
  %v264 = vpop.f32.mrf.mxu0
  %v265 = vadd.f32 0.0, %v264
  %v266 = vpop.f32.mrf.mxu0
  %267 = vmatprep.mubr.bf16.mxu0 0
  %268 = vmatmul.mubr.bf16.gmra.mxu0 %v122
  %v269 = vpop.f32.mrf.mxu0
  %v270 = vadd.f32 0.0, %v269
  %v271 = vpop.f32.mrf.mxu0
  %v272 = vpop.f32.mrf.mxu0
  %v273 = vadd.f32 0.0, %v272
  %v274 = vpop.f32.mrf.mxu0
  %275 = vdwg.mxu0
  %v276 = vadd.f32 %v35, %v214
  %v277 = vadd.f32 %v36, %v217
  %v278 = vadd.f32 %v37, %v222
  %v279 = vadd.f32 %v38, %v225
  %v280 = vadd.f32 %v39, %v230
  %v281 = vadd.f32 %v40, %v233
  %v282 = vadd.f32 %v41, %v238
  %v283 = vadd.f32 %v42, %v241
  %v284 = vadd.f32 %v43, %v246
  %v285 = vadd.f32 %v44, %v249
  %v286 = vadd.f32 %v45, %v254
  %v287 = vadd.f32 %v46, %v257
  %v288 = vadd.f32 %v47, %v262
  %v289 = vadd.f32 %v48, %v265
  %v290 = vadd.f32 %v49, %v270
  %v291 = vadd.f32 %v50, %v273
  %292 = vst [vmem:[#allocation2] sm:$0xff] %v276
  %293 = vst [vmem:[#allocation2 + $0x8] sm:$0xff] %v277
  %294 = vst [vmem:[#allocation2 + $0x10] sm:$0xff] %v278
  %295 = vst [vmem:[#allocation2 + $0x18] sm:$0xff] %v279
  %296 = vst [vmem:[#allocation2 + $0x20] sm:$0xff] %v280
  %297 = vst [vmem:[#allocation2 + $0x28] sm:$0xff] %v281
  %298 = vst [vmem:[#allocation2 + $0x30] sm:$0xff] %v282
  %299 = vst [vmem:[#allocation2 + $0x38] sm:$0xff] %v283
  %300 = vst [vmem:[#allocation2 + $0x40] sm:$0xff] %v284
  %301 = vst [vmem:[#allocation2 + $0x48] sm:$0xff] %v285
  %302 = vst [vmem:[#allocation2 + $0x50] sm:$0xff] %v286
  %303 = vst [vmem:[#allocation2 + $0x58] sm:$0xff] %v287
  %304 = vst [vmem:[#allocation2 + $0x60] sm:$0xff] %v288
  %305 = vst [vmem:[#allocation2 + $0x68] sm:$0xff] %v289
  %306 = vst [vmem:[#allocation2 + $0x70] sm:$0xff] %v290
  %307 = vst [vmem:[#allocation2 + $0x78] sm:$0xff] %v291
  // Predicated region
  $region18: #{_framework_forward.32} parent=0 // pred_check
    %p308 = pneg %p15
  $region19: #{_framework_forward.32} parent=0 // pred_check_branch
    %310 = sbr.rel (%p308) target = $region21
  $region20: #{_framework_forward.32} parent=0 // pred_region
    %v311 = vld [vmem:[#allocation2] sm:$0xff]
    %v312 = vld [vmem:[#allocation2 + $0x8] sm:$0xff]
    %v313 = vld [vmem:[#allocation2 + $0x10] sm:$0xff]
    %v314 = vld [vmem:[#allocation2 + $0x18] sm:$0xff]
    %v315 = vld [vmem:[#allocation2 + $0x20] sm:$0xff]
    %v316 = vld [vmem:[#allocation2 + $0x28] sm:$0xff]
    %v317 = vld [vmem:[#allocation2 + $0x30] sm:$0xff]
    %v318 = vld [vmem:[#allocation2 + $0x38] sm:$0xff]
    %v319 = vld [vmem:[#allocation2 + $0x40] sm:$0xff]
    %v320 = vld [vmem:[#allocation2 + $0x48] sm:$0xff]
    %v321 = vld [vmem:[#allocation2 + $0x50] sm:$0xff]
    %v322 = vld [vmem:[#allocation2 + $0x58] sm:$0xff]
    %v323 = vld [vmem:[#allocation2 + $0x60] sm:$0xff]
    %v324 = vld [vmem:[#allocation2 + $0x68] sm:$0xff]
    %v325 = vld [vmem:[#allocation2 + $0x70] sm:$0xff]
    %v326 = vld [vmem:[#allocation2 + $0x78] sm:$0xff]
    %v327 = vld [vmem:[%s2] sm:$0x1]
    %v329 = vlaneseq
    %v330 = vshrl.u32 %v329, 7
    %v331 = vsub.s32 0, %v330
    %v332 = vrot.slane %v327, %v331
    %v334 = vadd.f32 %v311, %v332
    %v335 = vadd.f32 %v312, %v332
    %v336 = vadd.f32 %v313, %v332
    %v337 = vadd.f32 %v314, %v332
    %v338 = vadd.f32 %v315, %v332
    %v339 = vadd.f32 %v316, %v332
    %v340 = vadd.f32 %v317, %v332
    %v341 = vadd.f32 %v318, %v332
    %v342 = vadd.f32 %v319, %v332
    %v343 = vadd.f32 %v320, %v332
    %v344 = vadd.f32 %v321, %v332
    %v345 = vadd.f32 %v322, %v332
    %v346 = vadd.f32 %v323, %v332
    %v347 = vadd.f32 %v324, %v332
    %v348 = vadd.f32 %v325, %v332
    %v349 = vadd.f32 %v326, %v332
    %v350 = vmax.f32 %v334, 0.0
    %v351 = vmax.f32 %v335, 0.0
    %v352 = vmax.f32 %v336, 0.0
    %v353 = vmax.f32 %v337, 0.0
    %v354 = vmax.f32 %v338, 0.0
    %v355 = vmax.f32 %v339, 0.0
    %v356 = vmax.f32 %v340, 0.0
    %v357 = vmax.f32 %v341, 0.0
    %v358 = vmax.f32 %v342, 0.0
    %v359 = vmax.f32 %v343, 0.0
    %v360 = vmax.f32 %v344, 0.0
    %v361 = vmax.f32 %v345, 0.0
    %v362 = vmax.f32 %v346, 0.0
    %v363 = vmax.f32 %v347, 0.0
    %v364 = vmax.f32 %v348, 0.0
    %v365 = vmax.f32 %v349, 0.0
    %366 = vst [vmem:[%s3] sm:$0xff] %v350
    %367 = vst [vmem:[%s3 + $0x8] sm:$0xff] %v351
    %368 = vst [vmem:[%s3 + $0x10] sm:$0xff] %v352
    %369 = vst [vmem:[%s3 + $0x18] sm:$0xff] %v353
    %370 = vst [vmem:[%s3 + $0x20] sm:$0xff] %v354
    %371 = vst [vmem:[%s3 + $0x28] sm:$0xff] %v355
    %372 = vst [vmem:[%s3 + $0x30] sm:$0xff] %v356
    %373 = vst [vmem:[%s3 + $0x38] sm:$0xff] %v357
    %374 = vst [vmem:[%s3 + $0x40] sm:$0xff] %v358
    %375 = vst [vmem:[%s3 + $0x48] sm:$0xff] %v359
    %376 = vst [vmem:[%s3 + $0x50] sm:$0xff] %v360
    %377 = vst [vmem:[%s3 + $0x58] sm:$0xff] %v361
    %378 = vst [vmem:[%s3 + $0x60] sm:$0xff] %v362
    %379 = vst [vmem:[%s3 + $0x68] sm:$0xff] %v363
    %380 = vst [vmem:[%s3 + $0x70] sm:$0xff] %v364
    %381 = vst [vmem:[%s3 + $0x78] sm:$0xff] %v365
  $region21: #{_framework_forward.32} parent=0 // pred_fallthru
    _
  // Predicated region
  $region22: #{_framework_forward.32} parent=0 // pred_check
    _
  $region23: #{_framework_forward.32} parent=0 // pred_check_branch
    %383 = sbr.rel (0) target = $region25
  $region24: #{_framework_forward.32} parent=0 // pred_region
    _
  $region25: #{_framework_forward.32} parent=0 // pred_fallthru
    _
  // Predicated region
  $region26: #{_framework_forward.32} parent=0 // pred_check
    _
  $region27: #{_framework_forward.32} parent=0 // pred_check_branch
    %385 = sbr.rel (0) target = $region29
  $region28: #{_framework_forward.32} parent=0 // pred_region
    _
  $region29: #{_framework_forward.32} parent=0 // pred_fallthru
    _

// kernel: _framework_forward.34
$region0: #{_framework_forward.34}
  #allocation0 [shape = 'u32[]', space=smem, size = 0x4, offset = 0x4, fixed_abs, tag = 'smem constant byte address 0x4 - core index']
  #allocation1 [shape = 'u32[144,128]{1,0:T(1,128)}', space=vmem, size = 0x12000, scoped, tag = 'internal scratch']
  #allocation2 [shape = 'f32[8,128]{1,0:T(8,128)}', space=vmem, size = 0x1000, scoped, tag = 'scratch operand']
  %s0 = inlined_call_operand.vmem [shape: bf16[8,128], index: 0, kind: input, shape index: {}]
  %s1 = inlined_call_operand.vmem [shape: bf16[128,128], index: 1, kind: input, shape index: {}]
  %s2 = inlined_call_operand.vmem [shape: f32[1,128], index: 2, kind: input, shape index: {}]
  %s3 = inlined_call_operand.vmem [shape: f32[8,128], index: 3, kind: output, shape index: {}]
  %s4 = sld [smem:[#allocation0]]
  $region30: #{_framework_forward.34} parent=0
    _
  %s6 = ssub.s32 1, %s4
  %s7 = scalar_select 0, %s6, %s4
  // Predicated region
  $region2: #{_framework_forward.34} parent=0 // pred_check
    _
  $region3: #{_framework_forward.34} parent=0 // pred_check_branch
    %9 = sbr.rel (0) target = $region5
  $region4: #{_framework_forward.34} parent=0 // pred_region
    _
  $region5: #{_framework_forward.34} parent=0 // pred_fallthru
    _
  // Predicated region
  $region6: #{_framework_forward.34} parent=0 // pred_check
    _
  $region7: #{_framework_forward.34} parent=0 // pred_check_branch
    %11 = sbr.rel (0) target = $region9
  $region8: #{_framework_forward.34} parent=0 // pred_region
    _
  $region9: #{_framework_forward.34} parent=0 // pred_fallthru
    _
  // Predicated region
  $region10: #{_framework_forward.34} parent=0 // pred_check
    _
  $region11: #{_framework_forward.34} parent=0 // pred_check_branch
    %13 = sbr.rel (0) target = $region13
  $region12: #{_framework_forward.34} parent=0 // pred_region
    _
  $region13: #{_framework_forward.34} parent=0 // pred_fallthru
    _
  %p15 = scmp.eq.s32.totalorder 0, 0
  // Predicated region
  $region14: #{_framework_forward.34} parent=0 // pred_check
    %p16 = pneg %p15
  $region15: #{_framework_forward.34} parent=0 // pred_check_branch
    %18 = sbr.rel (%p16) target = $region17
  $region16: #{_framework_forward.34} parent=0 // pred_region
    %19 = vst [vmem:[#allocation2] sm:$0xff] 0.0
  $region17: #{_framework_forward.34} parent=0 // pred_fallthru
    _
  %v20 = vld [vmem:[#allocation2] sm:$0xff]
  %v21 = vld [vmem:[%s0] sm:$0xf]
  %v22 = vld [vmem:[%s1] sm:$0xf]
  %v23 = vld [vmem:[%s1 + $0x4] sm:$0xf]
  %v24 = vld [vmem:[%s1 + $0x8] sm:$0xf]
  %v25 = vld [vmem:[%s1 + $0xc] sm:$0xf]
  %v26 = vld [vmem:[%s1 + $0x10] sm:$0xf]
  %v27 = vld [vmem:[%s1 + $0x14] sm:$0xf]
  %v28 = vld [vmem:[%s1 + $0x18] sm:$0xf]
  %v29 = vld [vmem:[%s1 + $0x1c] sm:$0xf]
  %v30 = vld [vmem:[%s1 + $0x20] sm:$0xf]
  %v31 = vld [vmem:[%s1 + $0x24] sm:$0xf]
  %v32 = vld [vmem:[%s1 + $0x28] sm:$0xf]
  %v33 = vld [vmem:[%s1 + $0x2c] sm:$0xf]
  %v34 = vld [vmem:[%s1 + $0x30] sm:$0xf]
  %v35 = vld [vmem:[%s1 + $0x34] sm:$0xf]
  %v36 = vld [vmem:[%s1 + $0x38] sm:$0xf]
  %v37 = vld [vmem:[%s1 + $0x3c] sm:$0xf]
  %v54 = vunpack.c.l.b16 %v22
  %v55 = vunpack.c.l.b16 %v23
  %v56 = vunpack.c.l.b16 %v24
  %v57 = vunpack.c.l.b16 %v25
  %v58 = vunpack.c.l.b16 %v26
  %v59 = vunpack.c.l.b16 %v27
  %v60 = vunpack.c.l.b16 %v28
  %v61 = vunpack.c.l.b16 %v29
  %v62 = vunpack.c.l.b16 %v30
  %v63 = vunpack.c.l.b16 %v31
  %v64 = vunpack.c.l.b16 %v32
  %v65 = vunpack.c.l.b16 %v33
  %v66 = vunpack.c.l.b16 %v34
  %v67 = vunpack.c.l.b16 %v35
  %v68 = vunpack.c.l.b16 %v36
  %v69 = vunpack.c.l.b16 %v37
  %v70 = vpack.c.b16 %v55, %v54
  %v71 = vpack.c.b16 %v57, %v56
  %v72 = vpack.c.b16 %v59, %v58
  %v73 = vpack.c.b16 %v61, %v60
  %v74 = vpack.c.b16 %v63, %v62
  %v75 = vpack.c.b16 %v65, %v64
  %v76 = vpack.c.b16 %v67, %v66
  %v77 = vpack.c.b16 %v69, %v68
  %86 = vmatprep.subr.bf16.mxu0 0
  %87 = vmatpush1.bf16.msra.mxu0 %v77
  %88 = vmatprep.subr.bf16.mxu0 0
  %89 = vmatpush1.bf16.msra.mxu0 %v76
  %90 = vmatprep.subr.bf16.mxu0 0
  %91 = vmatpush1.bf16.msra.mxu0 %v75
  %92 = vmatprep.subr.bf16.mxu0 0
  %93 = vmatpush1.bf16.msra.mxu0 %v74
  %94 = vmatprep.subr.bf16.mxu0 0
  %95 = vmatpush1.bf16.msra.mxu0 %v73
  %96 = vmatprep.subr.bf16.mxu0 0
  %97 = vmatpush1.bf16.msra.mxu0 %v72
  %98 = vmatprep.subr.bf16.mxu0 0
  %99 = vmatpush1.bf16.msra.mxu0 %v71
  %100 = vmatprep.subr.bf16.mxu0 0
  %101 = vmatpush1.bf16.msra.mxu0 %v70
  %102 = vmatprep.subr.bf16.mxu0 0
  %103 = vmatpush2.bf16.msra.mxu0 0
  %104 = vmatprep.subr.bf16.mxu0 0
  %105 = vmatpush2.bf16.msra.mxu0 0
  %106 = vmatprep.subr.bf16.mxu0 0
  %107 = vmatpush2.bf16.msra.mxu0 0
  %108 = vmatprep.subr.bf16.mxu0 0
  %109 = vmatpush2.bf16.msra.mxu0 0
  %110 = vmatprep.subr.bf16.mxu0 0
  %111 = vmatpush2.bf16.msra.mxu0 0
  %112 = vmatprep.subr.bf16.mxu0 0
  %113 = vmatpush2.bf16.msra.mxu0 0
  %114 = vmatprep.subr.bf16.mxu0 0
  %115 = vmatpush2.bf16.msra.mxu0 0
  %116 = vmatprep.subr.bf16.mxu0 0
  %117 = vmatpush2.bf16.msra.mxu0 0
  %118 = vmatprep.mubr.bf16.mxu0 0
  %119 = vmatmul.mubr.bf16.gmra.mxu0 %v21
  %v120 = vpop.f32.mrf.mxu0
  %v121 = vadd.f32 0.0, %v120
  %v122 = vpop.f32.mrf.mxu0
  %v123 = vpop.f32.mrf.mxu0
  %v124 = vpop.f32.mrf.mxu0
  %125 = vdwg.mxu0
  %v126 = vadd.f32 %v20, %v121
  %127 = vst [vmem:[#allocation2] sm:$0xff] %v126
  // Predicated region
  $region18: #{_framework_forward.34} parent=0 // pred_check
    %p128 = pneg %p15
  $region19: #{_framework_forward.34} parent=0 // pred_check_branch
    %130 = sbr.rel (%p128) target = $region21
  $region20: #{_framework_forward.34} parent=0 // pred_region
    %v131 = vld [vmem:[#allocation2] sm:$0xff]
    %v132 = vld [vmem:[%s2] sm:$0x1]
    %v134 = vlaneseq
    %v135 = vshrl.u32 %v134, 7
    %v136 = vsub.s32 0, %v135
    %v137 = vrot.slane %v132, %v136
    %v139 = vadd.f32 %v131, %v137
    %v140 = vmax.f32 %v139, 0.0
    %141 = vst [vmem:[%s3] sm:$0xff] %v140
  $region21: #{_framework_forward.34} parent=0 // pred_fallthru
    _
  // Predicated region
  $region22: #{_framework_forward.34} parent=0 // pred_check
    _
  $region23: #{_framework_forward.34} parent=0 // pred_check_branch
    %143 = sbr.rel (0) target = $region25
  $region24: #{_framework_forward.34} parent=0 // pred_region
    _
  $region25: #{_framework_forward.34} parent=0 // pred_fallthru
    _
  // Predicated region
  $region26: #{_framework_forward.34} parent=0 // pred_check
    _
  $region27: #{_framework_forward.34} parent=0 // pred_check_branch
    %145 = sbr.rel (0) target = $region29
  $region28: #{_framework_forward.34} parent=0 // pred_region
    _
  $region29: #{_framework_forward.34} parent=0 // pred_fallthru
    _

// kernel: _framework_forward.33
$region0: #{_framework_forward.33}
  #allocation0 [shape = 'u32[]', space=smem, size = 0x4, offset = 0x4, fixed_abs, tag = 'smem constant byte address 0x4 - core index']
  #allocation1 [shape = 'u32[144,128]{1,0:T(1,128)}', space=vmem, size = 0x12000, scoped, tag = 'internal scratch']
  #allocation2 [shape = 'f32[32,128]{1,0:T(8,128)}', space=vmem, size = 0x4000, scoped, tag = 'scratch operand']
  %s0 = inlined_call_operand.vmem [shape: bf16[32,128], index: 0, kind: input, shape index: {}]
  %s1 = inlined_call_operand.vmem [shape: bf16[128,128], index: 1, kind: input, shape index: {}]
  %s2 = inlined_call_operand.vmem [shape: f32[1,128], index: 2, kind: input, shape index: {}]
  %s3 = inlined_call_operand.vmem [shape: f32[32,128], index: 3, kind: output, shape index: {}]
  %s4 = sld [smem:[#allocation0]]
  $region30: #{_framework_forward.33} parent=0
    _
  %s6 = ssub.s32 1, %s4
  %s7 = scalar_select 0, %s6, %s4
  // Predicated region
  $region2: #{_framework_forward.33} parent=0 // pred_check
    _
  $region3: #{_framework_forward.33} parent=0 // pred_check_branch
    %9 = sbr.rel (0) target = $region5
  $region4: #{_framework_forward.33} parent=0 // pred_region
    _
  $region5: #{_framework_forward.33} parent=0 // pred_fallthru
    _
  // Predicated region
  $region6: #{_framework_forward.33} parent=0 // pred_check
    _
  $region7: #{_framework_forward.33} parent=0 // pred_check_branch
    %11 = sbr.rel (0) target = $region9
  $region8: #{_framework_forward.33} parent=0 // pred_region
    _
  $region9: #{_framework_forward.33} parent=0 // pred_fallthru
    _
  // Predicated region
  $region10: #{_framework_forward.33} parent=0 // pred_check
    _
  $region11: #{_framework_forward.33} parent=0 // pred_check_branch
    %13 = sbr.rel (0) target = $region13
  $region12: #{_framework_forward.33} parent=0 // pred_region
    _
  $region13: #{_framework_forward.33} parent=0 // pred_fallthru
    _
  %p15 = scmp.eq.s32.totalorder 0, 0
  // Predicated region
  $region14: #{_framework_forward.33} parent=0 // pred_check
    %p16 = pneg %p15
  $region15: #{_framework_forward.33} parent=0 // pred_check_branch
    %18 = sbr.rel (%p16) target = $region17
  $region16: #{_framework_forward.33} parent=0 // pred_region
    %19 = vst [vmem:[#allocation2] sm:$0xff] 0.0
    %20 = vst [vmem:[#allocation2 + $0x8] sm:$0xff] 0.0
    %21 = vst [vmem:[#allocation2 + $0x10] sm:$0xff] 0.0
    %22 = vst [vmem:[#allocation2 + $0x18] sm:$0xff] 0.0
  $region17: #{_framework_forward.33} parent=0 // pred_fallthru
    _
  %v23 = vld [vmem:[#allocation2] sm:$0xff]
  %v24 = vld [vmem:[#allocation2 + $0x8] sm:$0xff]
  %v25 = vld [vmem:[#allocation2 + $0x10] sm:$0xff]
  %v26 = vld [vmem:[#allocation2 + $0x18] sm:$0xff]
  %v27 = vld [vmem:[%s0] sm:$0xf]
  %v28 = vld [vmem:[%s0 + $0x4] sm:$0xf]
  %v29 = vld [vmem:[%s0 + $0x8] sm:$0xf]
  %v30 = vld [vmem:[%s0 + $0xc] sm:$0xf]
  %v31 = vld [vmem:[%s1] sm:$0xf]
  %v32 = vld [vmem:[%s1 + $0x4] sm:$0xf]
  %v33 = vld [vmem:[%s1 + $0x8] sm:$0xf]
  %v34 = vld [vmem:[%s1 + $0xc] sm:$0xf]
  %v35 = vld [vmem:[%s1 + $0x10] sm:$0xf]
  %v36 = vld [vmem:[%s1 + $0x14] sm:$0xf]
  %v37 = vld [vmem:[%s1 + $0x18] sm:$0xf]
  %v38 = vld [vmem:[%s1 + $0x1c] sm:$0xf]
  %v39 = vld [vmem:[%s1 + $0x20] sm:$0xf]
  %v40 = vld [vmem:[%s1 + $0x24] sm:$0xf]
  %v41 = vld [vmem:[%s1 + $0x28] sm:$0xf]
  %v42 = vld [vmem:[%s1 + $0x2c] sm:$0xf]
  %v43 = vld [vmem:[%s1 + $0x30] sm:$0xf]
  %v44 = vld [vmem:[%s1 + $0x34] sm:$0xf]
  %v45 = vld [vmem:[%s1 + $0x38] sm:$0xf]
  %v46 = vld [vmem:[%s1 + $0x3c] sm:$0xf]
  %v51 = vunpack.c.l.b16 %v27
  %v52 = vunpack.c.l.b16 %v28
  %v53 = vunpack.c.l.b16 %v29
  %v54 = vunpack.c.l.b16 %v30
  %v55 = vpack.c.b16 %v52, %v51
  %v56 = vpack.c.b16 %v54, %v53
  %v75 = vunpack.c.l.b16 %v31
  %v76 = vunpack.c.l.b16 %v32
  %v77 = vunpack.c.l.b16 %v33
  %v78 = vunpack.c.l.b16 %v34
  %v79 = vunpack.c.l.b16 %v35
  %v80 = vunpack.c.l.b16 %v36
  %v81 = vunpack.c.l.b16 %v37
  %v82 = vunpack.c.l.b16 %v38
  %v83 = vunpack.c.l.b16 %v39
  %v84 = vunpack.c.l.b16 %v40
  %v85 = vunpack.c.l.b16 %v41
  %v86 = vunpack.c.l.b16 %v42
  %v87 = vunpack.c.l.b16 %v43
  %v88 = vunpack.c.l.b16 %v44
  %v89 = vunpack.c.l.b16 %v45
  %v90 = vunpack.c.l.b16 %v46
  %v91 = vpack.c.b16 %v76, %v75
  %v92 = vpack.c.b16 %v78, %v77
  %v93 = vpack.c.b16 %v80, %v79
  %v94 = vpack.c.b16 %v82, %v81
  %v95 = vpack.c.b16 %v84, %v83
  %v96 = vpack.c.b16 %v86, %v85
  %v97 = vpack.c.b16 %v88, %v87
  %v98 = vpack.c.b16 %v90, %v89
  %107 = vmatprep.subr.bf16.mxu0 0
  %108 = vmatpush1.bf16.msra.mxu0 %v98
  %109 = vmatprep.subr.bf16.mxu0 0
  %110 = vmatpush1.bf16.msra.mxu0 %v97
  %111 = vmatprep.subr.bf16.mxu0 0
  %112 = vmatpush1.bf16.msra.mxu0 %v96
  %113 = vmatprep.subr.bf16.mxu0 0
  %114 = vmatpush1.bf16.msra.mxu0 %v95
  %115 = vmatprep.subr.bf16.mxu0 0
  %116 = vmatpush1.bf16.msra.mxu0 %v94
  %117 = vmatprep.subr.bf16.mxu0 0
  %118 = vmatpush1.bf16.msra.mxu0 %v93
  %119 = vmatprep.subr.bf16.mxu0 0
  %120 = vmatpush1.bf16.msra.mxu0 %v92
  %121 = vmatprep.subr.bf16.mxu0 0
  %122 = vmatpush1.bf16.msra.mxu0 %v91
  %123 = vmatprep.subr.bf16.mxu0 0
  %124 = vmatpush2.bf16.msra.mxu0 0
  %125 = vmatprep.subr.bf16.mxu0 0
  %126 = vmatpush2.bf16.msra.mxu0 0
  %127 = vmatprep.subr.bf16.mxu0 0
  %128 = vmatpush2.bf16.msra.mxu0 0
  %129 = vmatprep.subr.bf16.mxu0 0
  %130 = vmatpush2.bf16.msra.mxu0 0
  %131 = vmatprep.subr.bf16.mxu0 0
  %132 = vmatpush2.bf16.msra.mxu0 0
  %133 = vmatprep.subr.bf16.mxu0 0
  %134 = vmatpush2.bf16.msra.mxu0 0
  %135 = vmatprep.subr.bf16.mxu0 0
  %136 = vmatpush2.bf16.msra.mxu0 0
  %137 = vmatprep.subr.bf16.mxu0 0
  %138 = vmatpush2.bf16.msra.mxu0 0
  %139 = vmatprep.mubr.bf16.mxu0 0
  %140 = vmatmul.mubr.bf16.gmra.mxu0 %v55
  %v141 = vpop.f32.mrf.mxu0
  %v142 = vadd.f32 0.0, %v141
  %v143 = vpop.f32.mrf.mxu0
  %v144 = vpop.f32.mrf.mxu0
  %v145 = vadd.f32 0.0, %v144
  %v146 = vpop.f32.mrf.mxu0
  %147 = vmatprep.mubr.bf16.mxu0 0
  %148 = vmatmul.mubr.bf16.gmra.mxu0 %v56
  %v149 = vpop.f32.mrf.mxu0
  %v150 = vadd.f32 0.0, %v149
  %v151 = vpop.f32.mrf.mxu0
  %v152 = vpop.f32.mrf.mxu0
  %v153 = vadd.f32 0.0, %v152
  %v154 = vpop.f32.mrf.mxu0
  %155 = vdwg.mxu0
  %v156 = vadd.f32 %v23, %v142
  %v157 = vadd.f32 %v24, %v145
  %v158 = vadd.f32 %v25, %v150
  %v159 = vadd.f32 %v26, %v153
  %160 = vst [vmem:[#allocation2] sm:$0xff] %v156
  %161 = vst [vmem:[#allocation2 + $0x8] sm:$0xff] %v157
  %162 = vst [vmem:[#allocation2 + $0x10] sm:$0xff] %v158
  %163 = vst [vmem:[#allocation2 + $0x18] sm:$0xff] %v159
  // Predicated region
  $region18: #{_framework_forward.33} parent=0 // pred_check
    %p164 = pneg %p15
  $region19: #{_framework_forward.33} parent=0 // pred_check_branch
    %166 = sbr.rel (%p164) target = $region21
  $region20: #{_framework_forward.33} parent=0 // pred_region
    %v167 = vld [vmem:[#allocation2] sm:$0xff]
    %v168 = vld [vmem:[#allocation2 + $0x8] sm:$0xff]
    %v169 = vld [vmem:[#allocation2 + $0x10] sm:$0xff]
    %v170 = vld [vmem:[#allocation2 + $0x18] sm:$0xff]
    %v171 = vld [vmem:[%s2] sm:$0x1]
    %v173 = vlaneseq
    %v174 = vshrl.u32 %v173, 7
    %v175 = vsub.s32 0, %v174
    %v176 = vrot.slane %v171, %v175
    %v178 = vadd.f32 %v167, %v176
    %v179 = vadd.f32 %v168, %v176
    %v180 = vadd.f32 %v169, %v176
    %v181 = vadd.f32 %v170, %v176
    %v182 = vmax.f32 %v178, 0.0
    %v183 = vmax.f32 %v179, 0.0
    %v184 = vmax.f32 %v180, 0.0
    %v185 = vmax.f32 %v181, 0.0
    %186 = vst [vmem:[%s3] sm:$0xff] %v182
    %187 = vst [vmem:[%s3 + $0x8] sm:$0xff] %v183
    %188 = vst [vmem:[%s3 + $0x10] sm:$0xff] %v184
    %189 = vst [vmem:[%s3 + $0x18] sm:$0xff] %v185
  $region21: #{_framework_forward.33} parent=0 // pred_fallthru
    _
  // Predicated region
  $region22: #{_framework_forward.33} parent=0 // pred_check
    _
  $region23: #{_framework_forward.33} parent=0 // pred_check_branch
    %191 = sbr.rel (0) target = $region25
  $region24: #{_framework_forward.33} parent=0 // pred_region
    _
  $region25: #{_framework_forward.33} parent=0 // pred_fallthru
    _
  // Predicated region
  $region26: #{_framework_forward.33} parent=0 // pred_check
    _
  $region27: #{_framework_forward.33} parent=0 // pred_check_branch
    %193 = sbr.rel (0) target = $region29
  $region28: #{_framework_forward.33} parent=0 // pred_region
    _
  $region29: #{_framework_forward.33} parent=0 // pred_fallthru
    _

// kernel: _framework_forward.47
$region0: #{_framework_forward.47}
  #allocation0 [shape = 'u32[]', space=smem, size = 0x4, offset = 0x4, fixed_abs, tag = 'smem constant byte address 0x4 - core index']
  #allocation1 [shape = 'u32[144,128]{1,0:T(1,128)}', space=vmem, size = 0x12000, scoped, tag = 'internal scratch']
  %s0 = inlined_call_operand.vmem [shape: bf16[2,16,32], index: 0, kind: input, shape index: {}]
  %s1 = inlined_call_operand.vmem [shape: bf16[2,64,32], index: 1, kind: input, shape index: {}]
  %s2 = inlined_call_operand.vmem [shape: bf16[32,128], index: 2, kind: input, shape index: {}]
  %s3 = inlined_call_operand.vmem [shape: f32[1,128], index: 3, kind: input, shape index: {}]
  %s4 = inlined_call_operand.vmem [shape: bf16[32,32], index: 4, kind: input, shape index: {}]
  %s5 = inlined_call_operand.vmem [shape: f32[1,32], index: 5, kind: input, shape index: {}]
  %s6 = inlined_call_operand.vmem [shape: f32[2,8,64], index: 6, kind: output, shape index: {}]
  %s7 = sld [smem:[#allocation0]]
  $region57: #{_framework_forward.47} parent=0
    _
  %s9 = ssub.s32 1, %s7
  %s10 = scalar_select 0, %s9, %s7
  loop: start=0, step=1, limit=4
  $region2: #{_framework_forward.47} parent=0 // loop_pre_header
    _
  $region3: #{_framework_forward.47} parent=0 // loop_header
    %s12 = sphi 0, %s16
    %p13 = scmp.ge.s32.totalorder %s12, 4
    %s22 = sphi 0, %s24
    %s25 = sphi 0, %s22
    %s26 = sphi 0, %s25
    %s42 = sphi 0, %s26
    %s48 = sphi 0, %s50
    %s51 = sphi 0, %s48
    %s52 = sphi 0, %s51
    %s68 = sphi 0, %s52
    %s72 = sphi 0, %s72
    %s74 = sphi 0, %s72
    %s75 = sphi 0, %s74
    %s89 = sphi 0, %s75
    %s93 = sphi 0, %s93
    %s95 = sphi 0, %s93
    %s96 = sphi 0, %s95
    %s110 = sphi 0, %s96
    %s114 = sphi 0, %s114
    %s116 = sphi 0, %s114
    %s117 = sphi 0, %s116
    %s131 = sphi 0, %s117
    %s135 = sphi 0, %s135
    %s137 = sphi 0, %s135
    %s138 = sphi 0, %s137
    %s152 = sphi 0, %s138
    %s158 = sphi 0, %s160
    %s161 = sphi 0, %s158
    %s162 = sphi 0, %s161
    %s178 = sphi 0, %s162
  $region4: #{_framework_forward.47} parent=0 // loop_header_branch
    %15 = sbr.rel (%p13) target = $region8
  $region5: #{_framework_forward.47} parent=0 // loop_body
    %s17 = ssub.s32 %s12, 1
    %s18 = ssub.s32 %s12, 2
    %s19 = sadd.s32 %s12, 1
    %s20 = ssub.s32 %s12, %s19
    %p21 = scmp.eq.s32.totalorder %s20, 0
    %s23 = sadd.s32 %s22, 1
    %s24 = scalar_select %p21, %s22, %s23
    %p27 = pneg %p21
    %p28 = scmp.eq.s32.totalorder %s12, 1
    %p29 = por %p27, %p28
    %p30 = scmp.ne.s32.totalorder %s22, %s25
    %p31 = scmp.eq.s32.totalorder %s12, 0
    %p32 = por %p30, %p31
    %p33 = scmp.ne.s32.totalorder %s22, %s25
    %p34 = scmp.eq.s32.totalorder %s17, 1
    %p35 = por %p33, %p34
    %p36 = scmp.ne.s32.totalorder %s25, %s26
    %p37 = scmp.eq.s32.totalorder %s17, 0
    %p38 = por %p36, %p37
    %p39 = scmp.ne.s32.totalorder %s25, %s26
    %p40 = scmp.eq.s32.totalorder %s18, 1
    %p41 = por %p39, %p40
    %p43 = scmp.ne.s32.totalorder %s26, %s42
    %p44 = scmp.eq.s32.totalorder %s18, 0
    %p45 = por %p43, %p44
    %s46 = ssub.s32 %s12, %s19
    %p47 = scmp.eq.s32.totalorder %s46, 0
    %s49 = sadd.s32 %s48, 1
    %s50 = scalar_select %p47, %s48, %s49
    %p53 = pneg %p47
    %p54 = scmp.eq.s32.totalorder %s12, 1
    %p55 = por %p53, %p54
    %p56 = scmp.ne.s32.totalorder %s48, %s51
    %p57 = scmp.eq.s32.totalorder %s12, 0
    %p58 = por %p56, %p57
    %p59 = scmp.ne.s32.totalorder %s48, %s51
    %p60 = scmp.eq.s32.totalorder %s17, 1
    %p61 = por %p59, %p60
    %p62 = scmp.ne.s32.totalorder %s51, %s52
    %p63 = scmp.eq.s32.totalorder %s17, 0
    %p64 = por %p62, %p63
    %p65 = scmp.ne.s32.totalorder %s51, %s52
    %p66 = scmp.eq.s32.totalorder %s18, 1
    %p67 = por %p65, %p66
    %p69 = scmp.ne.s32.totalorder %s52, %s68
    %p70 = scmp.eq.s32.totalorder %s18, 0
    %p71 = por %p69, %p70
    %s73 = sadd.s32 %s72, 1
    %p76 = scmp.eq.s32.totalorder %s12, 1
    %p77 = scmp.ne.s32.totalorder %s72, %s74
    %p78 = scmp.eq.s32.totalorder %s12, 0
    %p79 = por %p77, %p78
    %p80 = scmp.ne.s32.totalorder %s72, %s74
    %p81 = scmp.eq.s32.totalorder %s17, 1
    %p82 = por %p80, %p81
    %p83 = scmp.ne.s32.totalorder %s74, %s75
    %p84 = scmp.eq.s32.totalorder %s17, 0
    %p85 = por %p83, %p84
    %p86 = scmp.ne.s32.totalorder %s74, %s75
    %p87 = scmp.eq.s32.totalorder %s18, 1
    %p88 = por %p86, %p87
    %p90 = scmp.ne.s32.totalorder %s75, %s89
    %p91 = scmp.eq.s32.totalorder %s18, 0
    %p92 = por %p90, %p91
    %s94 = sadd.s32 %s93, 1
    %p97 = scmp.eq.s32.totalorder %s12, 1
    %p98 = scmp.ne.s32.totalorder %s93, %s95
    %p99 = scmp.eq.s32.totalorder %s12, 0
    %p100 = por %p98, %p99
    %p101 = scmp.ne.s32.totalorder %s93, %s95
    %p102 = scmp.eq.s32.totalorder %s17, 1
    %p103 = por %p101, %p102
    %p104 = scmp.ne.s32.totalorder %s95, %s96
    %p105 = scmp.eq.s32.totalorder %s17, 0
    %p106 = por %p104, %p105
    %p107 = scmp.ne.s32.totalorder %s95, %s96
    %p108 = scmp.eq.s32.totalorder %s18, 1
    %p109 = por %p107, %p108
    %p111 = scmp.ne.s32.totalorder %s96, %s110
    %p112 = scmp.eq.s32.totalorder %s18, 0
    %p113 = por %p111, %p112
    %s115 = sadd.s32 %s114, 1
    %p118 = scmp.eq.s32.totalorder %s12, 1
    %p119 = scmp.ne.s32.totalorder %s114, %s116
    %p120 = scmp.eq.s32.totalorder %s12, 0
    %p121 = por %p119, %p120
    %p122 = scmp.ne.s32.totalorder %s114, %s116
    %p123 = scmp.eq.s32.totalorder %s17, 1
    %p124 = por %p122, %p123
    %p125 = scmp.ne.s32.totalorder %s116, %s117
    %p126 = scmp.eq.s32.totalorder %s17, 0
    %p127 = por %p125, %p126
    %p128 = scmp.ne.s32.totalorder %s116, %s117
    %p129 = scmp.eq.s32.totalorder %s18, 1
    %p130 = por %p128, %p129
    %p132 = scmp.ne.s32.totalorder %s117, %s131
    %p133 = scmp.eq.s32.totalorder %s18, 0
    %p134 = por %p132, %p133
    %s136 = sadd.s32 %s135, 1
    %p139 = scmp.eq.s32.totalorder %s12, 1
    %p140 = scmp.ne.s32.totalorder %s135, %s137
    %p141 = scmp.eq.s32.totalorder %s12, 0
    %p142 = por %p140, %p141
    %p143 = scmp.ne.s32.totalorder %s135, %s137
    %p144 = scmp.eq.s32.totalorder %s17, 1
    %p145 = por %p143, %p144
    %p146 = scmp.ne.s32.totalorder %s137, %s138
    %p147 = scmp.eq.s32.totalorder %s17, 0
    %p148 = por %p146, %p147
    %p149 = scmp.ne.s32.totalorder %s137, %s138
    %p150 = scmp.eq.s32.totalorder %s18, 1
    %p151 = por %p149, %p150
    %p153 = scmp.ne.s32.totalorder %s138, %s152
    %p154 = scmp.eq.s32.totalorder %s18, 0
    %p155 = por %p153, %p154
    %s156 = ssub.s32 %s12, %s19
    %p157 = scmp.eq.s32.totalorder %s156, 0
    %s159 = sadd.s32 %s158, 1
    %s160 = scalar_select %p157, %s158, %s159
    %p163 = pneg %p157
    %p164 = scmp.eq.s32.totalorder %s12, 1
    %p165 = por %p163, %p164
    %p166 = scmp.ne.s32.totalorder %s158, %s161
    %p167 = scmp.eq.s32.totalorder %s12, 0
    %p168 = por %p166, %p167
    %p169 = scmp.ne.s32.totalorder %s158, %s161
    %p170 = scmp.eq.s32.totalorder %s17, 1
    %p171 = por %p169, %p170
    %p172 = scmp.ne.s32.totalorder %s161, %s162
    %p173 = scmp.eq.s32.totalorder %s17, 0
    %p174 = por %p172, %p173
    %p175 = scmp.ne.s32.totalorder %s161, %s162
    %p176 = scmp.eq.s32.totalorder %s18, 1
    %p177 = por %p175, %p176
    %p179 = scmp.ne.s32.totalorder %s162, %s178
    %p180 = scmp.eq.s32.totalorder %s18, 0
    %p181 = por %p179, %p180
    %p182 = scmp.le.s32.totalorder 1, %s12
    %p183 = scmp.lt.s32.totalorder %s12, 3
    %p184 = pnand %p182, %p183
    %p185 = pneg %p184
    // Predicated region
    $region9: #{_framework_forward.47} parent=5 // pred_check
      _
    $region10: #{_framework_forward.47} parent=5 // pred_check_branch
      %187 = sbr.rel (%p184) target = $region12
    $region11: #{_framework_forward.47} parent=5 // pred_region
      %s188 = ssub.s32 %s12, 1
      // Predicated region
      $region13: #{_framework_forward.47} parent=11 // pred_check
        %p189 = pneg %p85
      $region14: #{_framework_forward.47} parent=11 // pred_check_branch
        %191 = sbr.rel (%p189) target = $region16
      $region15: #{_framework_forward.47} parent=11 // pred_region
        _
      $region16: #{_framework_forward.47} parent=11 // pred_fallthru
        _
      // Predicated region
      $region17: #{_framework_forward.47} parent=11 // pred_check
        %p192 = pneg %p106
      $region18: #{_framework_forward.47} parent=11 // pred_check_branch
        %194 = sbr.rel (%p192) target = $region20
      $region19: #{_framework_forward.47} parent=11 // pred_region
        _
      $region20: #{_framework_forward.47} parent=11 // pred_fallthru
        _
      // Predicated region
      $region21: #{_framework_forward.47} parent=11 // pred_check
        %p195 = pneg %p127
      $region22: #{_framework_forward.47} parent=11 // pred_check_branch
        %197 = sbr.rel (%p195) target = $region24
      $region23: #{_framework_forward.47} parent=11 // pred_region
        _
      $region24: #{_framework_forward.47} parent=11 // pred_fallthru
        _
      // Predicated region
      $region25: #{_framework_forward.47} parent=11 // pred_check
        %p198 = pneg %p148
      $region26: #{_framework_forward.47} parent=11 // pred_check_branch
        %200 = sbr.rel (%p198) target = $region28
      $region27: #{_framework_forward.47} parent=11 // pred_region
        _
      $region28: #{_framework_forward.47} parent=11 // pred_fallthru
        _
    $region12: #{_framework_forward.47} parent=5 // pred_fallthru
      _
    %p201 = scmp.lt.s32.totalorder %s12, 2
    // Predicated region
    $region29: #{_framework_forward.47} parent=5 // pred_check
      %p202 = pneg %p201
    $region30: #{_framework_forward.47} parent=5 // pred_check_branch
      %204 = sbr.rel (%p202) target = $region32
    $region31: #{_framework_forward.47} parent=5 // pred_region
      // Predicated region
      $region33: #{_framework_forward.47} parent=31 // pred_check
        %p205 = pneg %p32
      $region34: #{_framework_forward.47} parent=31 // pred_check_branch
        %207 = sbr.rel (%p205) target = $region36
      $region35: #{_framework_forward.47} parent=31 // pred_region
        %p208 = scmp.lt.s32.totalorder %s12, 1
        %s209 = scalar_select %p208, %s12, 1
        %s210 = smul.addr %s209, 2
        %s211 = smul.addr %s210, 4
        %s212 = scalar_lea.vmem %s0, %s211
      $region36: #{_framework_forward.47} parent=31 // pred_fallthru
        _
      // Predicated region
      $region37: #{_framework_forward.47} parent=31 // pred_check
        %p213 = pneg %p58
      $region38: #{_framework_forward.47} parent=31 // pred_check_branch
        %215 = sbr.rel (%p213) target = $region40
      $region39: #{_framework_forward.47} parent=31 // pred_region
        %p216 = scmp.lt.s32.totalorder %s12, 1
        %s217 = scalar_select %p216, %s12, 1
        %s218 = smul.addr %s217, 8
        %s219 = smul.addr %s218, 4
        %s220 = scalar_lea.vmem %s1, %s219
      $region40: #{_framework_forward.47} parent=31 // pred_fallthru
        _
    $region32: #{_framework_forward.47} parent=5 // pred_fallthru
      _
    %p221 = scmp.le.s32.totalorder 1, %s12
    %p222 = scmp.lt.s32.totalorder %s12, 3
    %p223 = pnand %p221, %p222
    %p224 = pneg %p223
    // Predicated region
    $region41: #{_framework_forward.47} parent=5 // pred_check
      _
    $region42: #{_framework_forward.47} parent=5 // pred_check_branch
      %226 = sbr.rel (%p223) target = $region44
    $region43: #{_framework_forward.47} parent=5 // pred_region
      %s227 = ssub.s32 %s12, 1
      %p228 = scmp.lt.s32.totalorder %s17, 1
      %s229 = scalar_select %p228, %s17, 1
      %s230 = smul.addr %s229, 2
      %s231 = smul.addr %s230, 4
      %s232 = scalar_lea.vmem %s0, %s231
      %p233 = pneg %p38
      %p234 = pneg %p35
      %p235 = scmp.lt.s32.totalorder %s17, 1
      %s236 = scalar_select %p235, %s17, 1
      %s237 = smul.addr %s236, 8
      %s238 = smul.addr %s237, 4
      %s239 = scalar_lea.vmem %s1, %s238
      %p240 = pneg %p64
      %p241 = pneg %p61
      %p242 = pneg %p85
      %p243 = pneg %p82
      %p244 = pneg %p106
      %p245 = pneg %p103
      %p246 = pneg %p127
      %p247 = pneg %p124
      %p248 = pneg %p148
      %p249 = pneg %p145
      %p250 = pneg %p174
      %p251 = pneg %p171
      %p252 = scmp.lt.s32.totalorder %s17, 1
      %s253 = scalar_select %p252, %s17, 1
      %s254 = smul.addr %s253, 8
      %s255 = scalar_lea.vmem %s6, %s254
      %p256 = scmp.lt.s32.totalorder %s17, 1
      %s257 = scalar_select %p256, %s17, 1
      %s258 = smul.addr %s257, 2
      %s259 = smul.addr %s258, 4
      %s260 = scalar_lea.vmem %s0, %s259
      %p261 = scmp.lt.s32.totalorder %s17, 1
      %s262 = scalar_select %p261, %s17, 1
      %s263 = smul.addr %s262, 8
      %s264 = smul.addr %s263, 4
      %s265 = scalar_lea.vmem %s1, %s264
      %p266 = scmp.lt.s32.totalorder %s17, 1
      %s267 = scalar_select %p266, %s17, 1
      %s268 = smul.addr %s267, 8
      %s269 = scalar_lea.vmem %s6, %s268
      %v271 = vld [vmem:[%s260] sm:$0xf]
      %v272 = vld [vmem:[%s260 + $0x4] sm:$0xf]
      %v273 = vld [vmem:[%s2] sm:$0xf]
      %v274 = vld [vmem:[%s2 + $0x4] sm:$0xf]
      %v275 = vld [vmem:[%s2 + $0x8] sm:$0xf]
      %v276 = vld [vmem:[%s2 + $0xc] sm:$0xf]
      %v277 = vld [vmem:[%s3] sm:$0x1]
      %v279 = vlaneseq
      %v280 = vshrl.u32 %v279, 7
      %v281 = vsub.s32 0, %v280
      %v282 = vrot.slane %v277, %v281
      %v286 = vunpack.c.l.b16 %v271
      %v287 = vunpack.c.l.b16 %v272
      %v288 = vpack.c.b16 %v287, %v286
      %v293 = vunpack.c.l.b16 %v273
      %v294 = vunpack.c.l.b16 %v274
      %v295 = vunpack.c.l.b16 %v275
      %v296 = vunpack.c.l.b16 %v276
      %v297 = vpack.c.b16 %v294, %v293
      %v298 = vpack.c.b16 %v296, %v295
      %vm301 = vcmask 261120
      %v303 = vsel %vm301, %v288, 0
      %305 = vmatprep.subr.bf16.mxu0 0
      %306 = vmatpush1.bf16.msra.mxu0 0
      %307 = vmatprep.subr.bf16.mxu0 0
      %308 = vmatpush1.bf16.msra.mxu0 0
      %309 = vmatprep.subr.bf16.mxu0 0
      %310 = vmatpush1.bf16.msra.mxu0 0
      %311 = vmatprep.subr.bf16.mxu0 0
      %312 = vmatpush1.bf16.msra.mxu0 0
      %313 = vmatprep.subr.bf16.mxu0 0
      %314 = vmatpush1.bf16.msra.mxu0 0
      %315 = vmatprep.subr.bf16.mxu0 0
      %316 = vmatpush1.bf16.msra.mxu0 0
      %317 = vmatprep.subr.bf16.mxu0 0
      %318 = vmatpush1.bf16.msra.mxu0 %v298
      %319 = vmatprep.subr.bf16.mxu0 0
      %320 = vmatpush1.bf16.msra.mxu0 %v297
      %321 = vmatprep.subr.bf16.mxu0 0
      %322 = vmatpush2.bf16.msra.mxu0 0
      %323 = vmatprep.subr.bf16.mxu0 0
      %324 = vmatpush2.bf16.msra.mxu0 0
      %325 = vmatprep.subr.bf16.mxu0 0
      %326 = vmatpush2.bf16.msra.mxu0 0
      %327 = vmatprep.subr.bf16.mxu0 0
      %328 = vmatpush2.bf16.msra.mxu0 0
      %329 = vmatprep.subr.bf16.mxu0 0
      %330 = vmatpush2.bf16.msra.mxu0 0
      %331 = vmatprep.subr.bf16.mxu0 0
      %332 = vmatpush2.bf16.msra.mxu0 0
      %333 = vmatprep.subr.bf16.mxu0 0
      %334 = vmatpush2.bf16.msra.mxu0 0
      %335 = vmatprep.subr.bf16.mxu0 0
      %336 = vmatpush2.bf16.msra.mxu0 0
      %337 = vmatprep.mubr.bf16.mxu0 0
      %338 = vmatmul.mubr.bf16.gmra.mxu0 %v303
      %v339 = vpop.f32.mrf.mxu0
      %v340 = vadd.f32 %v282, %v339
      %v341 = vpop.f32.mrf.mxu0
      %v342 = vpop.f32.mrf.mxu0
      %v343 = vadd.f32 %v282, %v342
      %v344 = vpop.f32.mrf.mxu0
      %345 = vdwg.mxu0
      %v346 = vld [vmem:[%s4] sm:$0xf]
      %v347 = vld [vmem:[%s4 + $0x4] sm:$0xf]
      %v348 = vld [vmem:[%s4 + $0x8] sm:$0xf]
      %v349 = vld [vmem:[%s4 + $0xc] sm:$0xf]
      %v350 = vld [vmem:[%s5] sm:$0x1]
      %v352 = vlaneseq
      %v353 = vshrl.u32 %v352, 7
      %v354 = vsub.s32 0, %v353
      %v355 = vrot.slane %v350, %v354
      %v361 = vunpack.c.l.b16 %v346
      %v362 = vunpack.c.l.b16 %v347
      %v363 = vunpack.c.l.b16 %v348
      %v364 = vunpack.c.l.b16 %v349
      %v365 = vpack.c.b16 %v362, %v361
      %v366 = vpack.c.b16 %v364, %v363
      %369 = vmatprep.subr.bf16.mxu0 0
      %370 = vmatpush1.bf16.msra.mxu0 0
      %371 = vmatprep.subr.bf16.mxu0 0
      %372 = vmatpush1.bf16.msra.mxu0 0
      %373 = vmatprep.subr.bf16.mxu0 0
      %374 = vmatpush1.bf16.msra.mxu0 0
      %375 = vmatprep.subr.bf16.mxu0 0
      %376 = vmatpush1.bf16.msra.mxu0 0
      %377 = vmatprep.subr.bf16.mxu0 0
      %378 = vmatpush1.bf16.msra.mxu0 0
      %379 = vmatprep.subr.bf16.mxu0 0
      %380 = vmatpush1.bf16.msra.mxu0 0
      %381 = vmatprep.subr.bf16.mxu0 0
      %382 = vmatpush1.bf16.msra.mxu0 %v366
      %383 = vmatprep.subr.bf16.mxu0 0
      %384 = vmatpush1.bf16.msra.mxu0 %v365
      %385 = vmatprep.subr.bf16.mxu0 0
      %386 = vmatpush2.bf16.msra.mxu0 0
      %387 = vmatprep.subr.bf16.mxu0 0
      %388 = vmatpush2.bf16.msra.mxu0 0
      %389 = vmatprep.subr.bf16.mxu0 0
      %390 = vmatpush2.bf16.msra.mxu0 0
      %391 = vmatprep.subr.bf16.mxu0 0
      %392 = vmatpush2.bf16.msra.mxu0 0
      %393 = vmatprep.subr.bf16.mxu0 0
      %394 = vmatpush2.bf16.msra.mxu0 0
      %395 = vmatprep.subr.bf16.mxu0 0
      %396 = vmatpush2.bf16.msra.mxu0 0
      %397 = vmatprep.subr.bf16.mxu0 0
      %398 = vmatpush2.bf16.msra.mxu0 0
      %399 = vmatprep.subr.bf16.mxu0 0
      %400 = vmatpush2.bf16.msra.mxu0 0
      %401 = vmatprep.mubr.bf16.mxu0 0
      %402 = vmatmul.mubr.bf16.gmra.mxu0 %v303
      %v403 = vpop.f32.mrf.mxu0
      %v404 = vadd.f32 %v355, %v403
      %v405 = vpop.f32.mrf.mxu0
      %v406 = vpop.f32.mrf.mxu0
      %v407 = vadd.f32 %v355, %v406
      %v408 = vpop.f32.mrf.mxu0
      %409 = vdwg.mxu0
      %v410 = vpack.c.bf16 %v407, %v404
      %v411 = vld [vmem:[%s265] sm:$0xf]
      %v412 = vld [vmem:[%s265 + $0x4] sm:$0xf]
      %v413 = vld [vmem:[%s265 + $0x8] sm:$0xf]
      %v414 = vld [vmem:[%s265 + $0xc] sm:$0xf]
      %v415 = vld [vmem:[%s265 + $0x10] sm:$0xf]
      %v416 = vld [vmem:[%s265 + $0x14] sm:$0xf]
      %v417 = vld [vmem:[%s265 + $0x18] sm:$0xf]
      %v418 = vld [vmem:[%s265 + $0x1c] sm:$0xf]
      %v427 = vunpack.c.l.b16 %v411
      %v428 = vunpack.c.l.b16 %v412
      %v429 = vunpack.c.l.b16 %v413
      %v430 = vunpack.c.l.b16 %v414
      %v431 = vunpack.c.l.b16 %v415
      %v432 = vunpack.c.l.b16 %v416
      %v433 = vunpack.c.l.b16 %v417
      %v434 = vunpack.c.l.b16 %v418
      %v435 = vpack.c.b16 %v428, %v427
      %v436 = vpack.c.b16 %v430, %v429
      %v437 = vpack.c.b16 %v432, %v431
      %v438 = vpack.c.b16 %v434, %v433
      %v440 = vsel %vm301, %v410, 0
      %v443 = vsel %vm301, %v435, 0
      %v446 = vsel %vm301, %v436, 0
      %v449 = vsel %vm301, %v437, 0
      %v452 = vsel %vm301, %v438, 0
      %454 = vmatprep.subr.bf16.mxu0 0
      %455 = vmatpush1.bf16.xpose.msra.mxu0 0
      %456 = vmatprep.subr.bf16.mxu0 0
      %457 = vmatpush1.bf16.xpose.msra.mxu0 0
      %458 = vmatprep.subr.bf16.mxu0 0
      %459 = vmatpush1.bf16.xpose.msra.mxu0 0
      %460 = vmatprep.subr.bf16.mxu0 0
      %461 = vmatpush1.bf16.xpose.msra.mxu0 0
      %462 = vmatprep.subr.bf16.mxu0 0
      %463 = vmatpush1.bf16.xpose.msra.mxu0 %v452
      %464 = vmatprep.subr.bf16.mxu0 0
      %465 = vmatpush1.bf16.xpose.msra.mxu0 %v449
      %466 = vmatprep.subr.bf16.mxu0 0
      %467 = vmatpush1.bf16.xpose.msra.mxu0 %v446
      %468 = vmatprep.subr.bf16.mxu0 0
      %469 = vmatpush1.bf16.xpose.msra.mxu0 %v443
      %470 = vmatprep.subr.bf16.mxu0 0
      %471 = vmatpush2.bf16.xpose.msra.mxu0 0
      %472 = vmatprep.subr.bf16.mxu0 0
      %473 = vmatpush2.bf16.xpose.msra.mxu0 0
      %474 = vmatprep.subr.bf16.mxu0 0
      %475 = vmatpush2.bf16.xpose.msra.mxu0 0
      %476 = vmatprep.subr.bf16.mxu0 0
      %477 = vmatpush2.bf16.xpose.msra.mxu0 0
      %478 = vmatprep.subr.bf16.mxu0 0
      %479 = vmatpush2.bf16.xpose.msra.mxu0 0
      %480 = vmatprep.subr.bf16.mxu0 0
      %481 = vmatpush2.bf16.xpose.msra.mxu0 0
      %482 = vmatprep.subr.bf16.mxu0 0
      %483 = vmatpush2.bf16.xpose.msra.mxu0 0
      %484 = vmatprep.subr.bf16.mxu0 0
      %485 = vmatpush2.bf16.xpose.msra.mxu0 0
      %486 = vmatprep.mubr.bf16.mxu0 0
      %487 = vmatmul.mubr.bf16.gmra.mxu0 %v440
      %v488 = vpop.f32.mrf.mxu0
      %v489 = vadd.f32 0.0, %v488
      %v490 = vpop.f32.mrf.mxu0
      %v491 = vpop.f32.mrf.mxu0
      %v492 = vadd.f32 0.0, %v491
      %v493 = vpop.f32.mrf.mxu0
      %494 = vdwg.mxu0
      %495 = vmax.xlane.f32.xlu0 %v340
      %v496 = vpop.xlane.xlu0 %495
      %497 = vmax.xlane.f32.xlu0 %v343
      %v498 = vpop.xlane.xlu0 %497
      %v499 = vsub.f32 %v340, %v496
      %v500 = vsub.f32 %v343, %v498
      %v501 = vmul.f32 %v499, 1.442695
      %v502 = vpow.pop %v501
      %v503 = vmul.f32 %v500, 1.442695
      %v504 = vpow.pop %v503
      %505 = vadd.xlane.f32.xlu0 %v502
      %v506 = vpop.xlane.xlu0 %505
      %507 = vadd.xlane.f32.xlu0 %v504
      %v508 = vpop.xlane.xlu0 %507
      %v509 = vrcp.pop %v506
      %v510 = vmul.f32 %v502, %v509
      %v511 = vrcp.pop %v508
      %v512 = vmul.f32 %v504, %v511
      %v513 = vxor.u32 %v489, 2147483648
      %v514 = vxor.u32 %v492, 2147483648
      %v515 = vmul.f32 %v513, 1.442695
      %v516 = vpow.pop %v515
      %v517 = vmul.f32 %v514, 1.442695
      %v518 = vpow.pop %v517
      %v519 = vadd.f32 %v516, 1.0
      %v520 = vadd.f32 %v518, 1.0
      %v521 = vrcp.pop %v519
      %v522 = vmul.f32 1.0, %v521
      %v523 = vrcp.pop %v520
      %v524 = vmul.f32 1.0, %v523
      %525 = vxpose.xlu0.b32.start [1/16] %v510, 128
      %526 = vxpose.xlu0.b32.cont [2/16] %v512, 128
      %527 = vxpose.xlu0.b32.cont [3/16] 0.0, 128
      %528 = vxpose.xlu0.b32.cont [4/16] 0.0, 128
      %529 = vxpose.xlu0.b32.cont [5/16] 0.0, 128
      %530 = vxpose.xlu0.b32.cont [6/16] 0.0, 128
      %531 = vxpose.xlu0.b32.cont [7/16] 0.0, 128
      %532 = vxpose.xlu0.b32.cont [8/16] 0.0, 128
      %533 = vxpose.xlu0.b32.cont [9/16] 0.0, 128
      %534 = vxpose.xlu0.b32.cont [10/16] 0.0, 128
      %535 = vxpose.xlu0.b32.cont [11/16] 0.0, 128
      %536 = vxpose.xlu0.b32.cont [12/16] 0.0, 128
      %537 = vxpose.xlu0.b32.cont [13/16] 0.0, 128
      %538 = vxpose.xlu0.b32.cont [14/16] 0.0, 128
      %539 = vxpose.xlu0.b32.cont [15/16] 0.0, 128
      %540 = vxpose.xlu0.b32.end [16/16] 0.0, 128
      %v541 = vpop.trf.xlu0
      %v542 = vpop.trf.xlu0
      %v543 = vpop.trf.xlu0
      %v544 = vpop.trf.xlu0
      %v545 = vpop.trf.xlu0
      %v546 = vpop.trf.xlu0
      %v547 = vpop.trf.xlu0
      %v548 = vpop.trf.xlu0
      %v549 = vpop.trf.xlu0
      %v550 = vpop.trf.xlu0
      %v551 = vpop.trf.xlu0
      %v552 = vpop.trf.xlu0
      %v553 = vpop.trf.xlu0
      %v554 = vpop.trf.xlu0
      %v555 = vpop.trf.xlu0
      %v556 = vpop.trf.xlu0
      %vm557 = vcmask 130048
      %v559 = vsel %vm557, %v541, 0
      %561 = vmatprep.subr.mxu0 0.0
      %562 = vmatpush1.msra.mxu0 0.0
      %563 = vmatprep.subr.mxu0 0.0
      %564 = vmatpush1.msra.mxu0 0.0
      %565 = vmatprep.subr.mxu0 0.0
      %566 = vmatpush1.msra.mxu0 0.0
      %567 = vmatprep.subr.mxu0 0.0
      %568 = vmatpush1.msra.mxu0 0.0
      %569 = vmatprep.subr.mxu0 0.0
      %570 = vmatpush1.msra.mxu0 0.0
      %571 = vmatprep.subr.mxu0 0.0
      %572 = vmatpush1.msra.mxu0 0.0
      %573 = vmatprep.subr.mxu0 0.0
      %574 = vmatpush1.msra.mxu0 0.0
      %575 = vmatprep.subr.mxu0 0.0
      %576 = vmatpush1.msra.mxu0 0.0
      %577 = vmatprep.subr.mxu0 0.0
      %578 = vmatpush1.msra.mxu0 0.0
      %579 = vmatprep.subr.mxu0 0.0
      %580 = vmatpush1.msra.mxu0 0.0
      %581 = vmatprep.subr.mxu0 0.0
      %582 = vmatpush1.msra.mxu0 0.0
      %583 = vmatprep.subr.mxu0 0.0
      %584 = vmatpush1.msra.mxu0 0.0
      %585 = vmatprep.subr.mxu0 0.0
      %586 = vmatpush1.msra.mxu0 0.0
      %587 = vmatprep.subr.mxu0 0.0
      %588 = vmatpush1.msra.mxu0 0.0
      %589 = vmatprep.subr.mxu0 0.0
      %590 = vmatpush1.msra.mxu0 %v524
      %591 = vmatprep.subr.mxu0 0.0
      %592 = vmatpush1.msra.mxu0 %v522
      %593 = vmatprep.subr.mxu0 0.0
      %594 = vmatpush2.msra.mxu0 0.0
      %595 = vmatprep.subr.mxu0 0.0
      %596 = vmatpush2.msra.mxu0 0.0
      %597 = vmatprep.subr.mxu0 0.0
      %598 = vmatpush2.msra.mxu0 0.0
      %599 = vmatprep.subr.mxu0 0.0
      %600 = vmatpush2.msra.mxu0 0.0
      %601 = vmatprep.subr.mxu0 0.0
      %602 = vmatpush2.msra.mxu0 0.0
      %603 = vmatprep.subr.mxu0 0.0
      %604 = vmatpush2.msra.mxu0 0.0
      %605 = vmatprep.subr.mxu0 0.0
      %606 = vmatpush2.msra.mxu0 0.0
      %607 = vmatprep.subr.mxu0 0.0
      %608 = vmatpush2.msra.mxu0 0.0
      %609 = vmatprep.subr.mxu0 0.0
      %610 = vmatpush2.msra.mxu0 0.0
      %611 = vmatprep.subr.mxu0 0.0
      %612 = vmatpush2.msra.mxu0 0.0
      %613 = vmatprep.subr.mxu0 0.0
      %614 = vmatpush2.msra.mxu0 0.0
      %615 = vmatprep.subr.mxu0 0.0
      %616 = vmatpush2.msra.mxu0 0.0
      %617 = vmatprep.subr.mxu0 0.0
      %618 = vmatpush2.msra.mxu0 0.0
      %619 = vmatprep.subr.mxu0 0.0
      %620 = vmatpush2.msra.mxu0 0.0
      %621 = vmatprep.subr.mxu0 0.0
      %622 = vmatpush2.msra.mxu0 0.0
      %623 = vmatprep.subr.mxu0 0.0
      %624 = vmatpush2.msra.mxu0 0.0
      %625 = vmatprep.mubr.f32.mxu0 0.0
      %626 = vmatmul.mubr.f32.gmra.mxu0 %v559
      %v627 = vpop.f32.mrf.mxu0
      %v628 = vadd.f32 0.0, %v627
      %v629 = vpop.f32.mrf.mxu0
      %630 = vdwg.mxu0
      %vm631 = vcmask 523264
      %632 = vst.msk [vmem:[%s269] sm:$0xff] %vm631, %v628
      %p633 = scmp.lt.s32.totalorder %s17, 1
      %s634 = scalar_select %p633, %s17, 1
      %s635 = smul.addr %s634, 8
      %s636 = scalar_lea.vmem %s6, %s635
      // Predicated region
      $region45: #{_framework_forward.47} parent=43 // pred_check
        %p637 = pneg %p171
      $region46: #{_framework_forward.47} parent=43 // pred_check_branch
        %639 = sbr.rel (%p637) target = $region48
      $region47: #{_framework_forward.47} parent=43 // pred_region
        _
      $region48: #{_framework_forward.47} parent=43 // pred_fallthru
        _
    $region44: #{_framework_forward.47} parent=5 // pred_fallthru
      _
    %p640 = scmp.le.s32.totalorder 2, %s12
    // Predicated region
    $region49: #{_framework_forward.47} parent=5 // pred_check
      %p641 = pneg %p640
    $region50: #{_framework_forward.47} parent=5 // pred_check_branch
      %643 = sbr.rel (%p641) target = $region52
    $region51: #{_framework_forward.47} parent=5 // pred_region
      %s644 = ssub.s32 %s12, 2
      // Predicated region
      $region53: #{_framework_forward.47} parent=51 // pred_check
        %p645 = pneg %p177
      $region54: #{_framework_forward.47} parent=51 // pred_check_branch
        %647 = sbr.rel (%p645) target = $region56
      $region55: #{_framework_forward.47} parent=51 // pred_region
        %p648 = scmp.lt.s32.totalorder %s18, 1
        %s649 = scalar_select %p648, %s18, 1
        %s650 = smul.addr %s649, 8
        %s651 = scalar_lea.vmem %s6, %s650
      $region56: #{_framework_forward.47} parent=51 // pred_fallthru
        _
    $region52: #{_framework_forward.47} parent=5 // pred_fallthru
      _
  $region6: #{_framework_forward.47} parent=0 // loop_footer
    %s16 = sadd.s32 1, %s12
  $region7: #{_framework_forward.47} parent=0 // loop_footer_branch
    %11 = sbr.rel target = $region3
  $region8: #{_framework_forward.47} parent=0 // loop_exit
    _

</llo_original>
